<compile_context>
chip_gen: v7x
topology: tpu7x:2x2x1
jax: 0.10.0
libtpu: 0.0.40
codegen_flags: <defaults>
</compile_context>

<pallas_src>
import jax
import jax.numpy as jnp
from jax import lax
from jax.experimental import pallas as pl
from jax.experimental.pallas import tpu as pltpu


def dqn_rnn_forward(state, prepared_params, n_actions):
    """state: (B, T, D) float32 batch-first, like the PyTorch module.

    prepared_params: output of prepare_params() (gate-reordered, bf16 matmul
    operands, lane-padded fc3)."""
    state = state.astype(jnp.float32)
    B, T, D = state.shape
    w_ih, w_hh, b_lstm, w2, b2, w3, b3 = prepared_params
    H = w_hh.shape[0]
    G = 4 * H
    F2 = w2.shape[1]
    A_pad = w3.shape[1]

    # Layout guards: gate slices sig[:, k*H:(k+1)*H] need H % 128 == 0 (lane
    # aligned); per-step gx blocks [t*B:(t+1)*B] need B % 8 == 0 (sublane
    # aligned).  Default fc1_dims=128 satisfies this.
    assert H % 128 == 0, "fc1_dims must be a multiple of 128 (lane-aligned gate slices)"
    assert B % 8 == 0, "batch must be a multiple of 8 (sublane-aligned timestep blocks)"

    # Time-major and flattened: row t*B + b, so each timestep is one contiguous
    # sublane-aligned (B, D) block inside the kernel.  (tiny; negligible.)
    x_tm = jnp.transpose(state, (1, 0, 2)).reshape(T * B, D)

    full2 = lambda i: (0, 0)

    def kernel(x_ref, wih_ref, whh_ref, b_ref,
               w2_hbm, b2_hbm, w3_hbm, b3_hbm,
               q_ref,
               gx_ref, w2_buf, b2_buf, w3_buf, b3_buf, dma_sem):
        # ---- Start MLP-head weight DMAs now; they are only needed after the
        #      serial recurrence, so their transfer is hidden behind it. ----
        cp_w2 = pltpu.make_async_copy(w2_hbm, w2_buf, dma_sem.at[0])
        cp_b2 = pltpu.make_async_copy(b2_hbm, b2_buf, dma_sem.at[1])
        cp_w3 = pltpu.make_async_copy(w3_hbm, w3_buf, dma_sem.at[2])
        cp_b3 = pltpu.make_async_copy(b3_hbm, b3_buf, dma_sem.at[3])
        cp_w2.start()
        cp_b2.start()
        cp_w3.start()
        cp_b3.start()

        # ---- Hoisted input projection for ALL timesteps (one MXU matmul) ----
        gx_ref[...] = (
            jnp.dot(x_ref[...].astype(jnp.bfloat16), wih_ref[...],
                    preferred_element_type=jnp.float32)
            + b_ref[...])

        # Load W_hh once; feeding the same live value to every step's dot lets
        # Mosaic keep the MXU weight push out of the unrolled serial loop.
        whh = whh_ref[...]
        # TODO(synk): verify via bundle dump that the RHS push is hoisted; if
        # not, use pltpu.matmul_push_rhs/_acc_lhs/_pop to stage W_hh explicitly.

        h = jnp.zeros((B, H), jnp.float32)
        c = jnp.zeros((B, H), jnp.float32)

        # ---- Serial LSTM recurrence, fully unrolled (T small & static).
        #      For T > ~32 switch to lax.fori_loop with partial unroll. ----
        for t in range(T):
            g_t = gx_ref[t * B:(t + 1) * B, :] + jnp.dot(
                h.astype(jnp.bfloat16), whh,
                preferred_element_type=jnp.float32)
            # Gates were reordered in the wrapper to [i | f | o | g]:
            sig = jax.nn.sigmoid(g_t[:, :3 * H])   # one EUP pass over 3H lanes
            i_g = sig[:, 0:H]
            f_g = sig[:, H:2 * H]
            o_g = sig[:, 2 * H:3 * H]
            g_g = jnp.tanh(g_t[:, 3 * H:])
            c = f_g * c + i_g * g_g
            h = o_g * jnp.tanh(c)

        # ---- MLP head: only now block on the deferred weight DMAs ----
        cp_w2.wait()
        cp_b2.wait()
        cp_w3.wait()
        cp_b3.wait()
        z = jnp.maximum(
            jnp.dot(h.astype(jnp.bfloat16), w2_buf[...],
                    preferred_element_type=jnp.float32) + b2_buf[...],
            0.0)
        q = (jnp.dot(z.astype(jnp.bfloat16), w3_buf[...],
                     preferred_element_type=jnp.float32) + b3_buf[...])
        q_ref[...] = q.astype(q_ref.dtype)          # lane-dense (B, 128) store

    q_pad = pl.pallas_call(
        kernel,
        out_shape=jax.ShapeDtypeStruct((B, A_pad), jnp.float32),
        grid_spec=pltpu.PrefetchScalarGridSpec(
            num_scalar_prefetch=0,
            grid=(1,),
            in_specs=[
                pl.BlockSpec((T * B, D), full2),     # x, time-major flattened
                pl.BlockSpec((D, G), full2),         # W_ih^T  (bf16, reordered)
                pl.BlockSpec((H, G), full2),         # W_hh^T  (bf16, reordered)
                pl.BlockSpec((1, G), full2),         # b_ih+b_hh (f32, reordered)
                pl.BlockSpec(memory_space=pl.ANY),   # fc2 weight^T (HBM, manual DMA)
                pl.BlockSpec(memory_space=pl.ANY),   # fc2 bias     (HBM, manual DMA)
                pl.BlockSpec(memory_space=pl.ANY),   # fc3 weight^T padded (HBM)
                pl.BlockSpec(memory_space=pl.ANY),   # fc3 bias padded     (HBM)
            ],
            out_specs=pl.BlockSpec((B, A_pad), full2),
            scratch_shapes=[
                pltpu.VMEM((T * B, G), jnp.float32),   # hoisted x@W_ih gates
                pltpu.VMEM((H, F2), jnp.bfloat16),     # fc2 weight buffer
                pltpu.VMEM((1, F2), jnp.float32),      # fc2 bias buffer
                pltpu.VMEM((F2, A_pad), jnp.bfloat16), # fc3 weight buffer
                pltpu.VMEM((1, A_pad), jnp.float32),   # fc3 bias buffer
                pltpu.SemaphoreType.DMA((4,)),         # one sem per deferred copy
            ],
        ),
        compiler_params=pltpu.CompilerParams(
            dimension_semantics=("arbitrary",)),
    )(x_tm, w_ih, w_hh, b_lstm, w2, b2, w3, b3)

    return q_pad[:, :n_actions]


def init_params(key, input_dims, n_actions, fc1_dims=128, fc2_dims=512):
    """Synthetic parameters matching the PyTorch module's shapes, stored
    pre-transposed to (in, out), f32, PyTorch LSTM gate order [i, f, g, o].
    NOTE: b_lstm here stands for the pre-summed (b_ih + b_hh); when loading
    real PyTorch weights, sum the two LSTM biases before prepare_params."""
    ks = jax.random.split(key, 7)
    H = fc1_dims
    scale = 0.1
    w_ih = scale * jax.random.normal(ks[0], (input_dims, 4 * H), jnp.float32)
    w_hh = scale * jax.random.normal(ks[1], (H, 4 * H), jnp.float32)
    b_lstm = scale * jax.random.normal(ks[2], (1, 4 * H), jnp.float32)  # b_ih+b_hh
    w2 = scale * jax.random.normal(ks[3], (H, fc2_dims), jnp.float32)
    b2 = scale * jax.random.normal(ks[4], (1, fc2_dims), jnp.float32)
    w3 = scale * jax.random.normal(ks[5], (fc2_dims, n_actions), jnp.float32)
    b3 = scale * jax.random.normal(ks[6], (1, n_actions), jnp.float32)
    return (w_ih, w_hh, b_lstm, w2, b2, w3, b3)


def prepare_params(params):
    """One-time kernel-side weight prep:
       * reorder LSTM gate columns [i,f,g,o] -> [i,f,o,g],
       * cast matmul operands to bf16 (biases stay f32),
       * pad fc3 output columns to a lane-dense multiple of 128."""
    w_ih, w_hh, b_lstm, w2, b2, w3, b3 = params
    H = w_hh.shape[0]
    A = w3.shape[1]
    A_pad = ((A + 127) // 128) * 128

    def reorder(m):  # [i | f | g | o] -> [i | f | o | g]
        return jnp.concatenate(
            [m[..., :2 * H], m[..., 3 * H:4 * H], m[..., 2 * H:3 * H]], axis=-1)

    w_ih_r = reorder(w_ih).astype(jnp.bfloat16)
    w_hh_r = reorder(w_hh).astype(jnp.bfloat16)
    b_r = reorder(b_lstm).astype(jnp.float32)

    w3_p = jnp.zeros((w3.shape[0], A_pad), jnp.float32).at[:, :A].set(w3)
    w3_p = w3_p.astype(jnp.bfloat16)
    b3_p = jnp.zeros((1, A_pad), jnp.float32).at[:, :A].set(b3)

    return (w_ih_r, w_hh_r, b_r,
            w2.astype(jnp.bfloat16), b2.astype(jnp.float32),
            w3_p, b3_p)


def reference_forward(state, params, matmul_dtype=jnp.float32):
    """Pure-JAX reference replicating torch semantics (gate order i,f,g,o).
    matmul_dtype=bf16 mirrors the kernel's mixed-precision matmuls."""
    w_ih, w_hh, b_lstm, w2, b2, w3, b3 = params
    B, T, D = state.shape
    H = w_hh.shape[0]
    md = matmul_dtype

    def mm(a, b):
        return jnp.dot(a.astype(md), b.astype(md),
                       preferred_element_type=jnp.float32)

    def step(carry, x_t):
        h, c = carry
        gates = mm(x_t, w_ih) + mm(h, w_hh) + b_lstm[0]
        i = jax.nn.sigmoid(gates[:, 0 * H:1 * H])
        f = jax.nn.sigmoid(gates[:, 1 * H:2 * H])
        g = jnp.tanh(gates[:, 2 * H:3 * H])
        o = jax.nn.sigmoid(gates[:, 3 * H:4 * H])
        c = f * c + i * g
        h = o * jnp.tanh(c)
        return (h, c), None

    h0 = jnp.zeros((B, H), jnp.float32)
    c0 = jnp.zeros((B, H), jnp.float32)
    (h_last, _), _ = lax.scan(step, (h0, c0), jnp.transpose(state, (1, 0, 2)))
    z = jnp.maximum(mm(h_last, w2) + b2[0], 0.0)
    return mm(z, w3) + b3[0]


if __name__ == "__main__":
    # Small shapes consistent with the module: batch=8, seq=8, input_dims=16,
    # fc1_dims=128 (default), fc2_dims=512 (default), n_actions=4.
    B, T, D = 8, 8, 16
    N_ACTIONS = 4

    key = jax.random.PRNGKey(0)
    k_state, k_params = jax.random.split(key)
    state = jax.random.normal(k_state, (B, T, D), jnp.float32)
    params = init_params(k_params, input_dims=D, n_actions=N_ACTIONS)
    prepared = prepare_params(params)

    q = dqn_rnn_forward(state, prepared, N_ACTIONS)
    q = jax.block_until_ready(q)
    assert q.shape == (B, N_ACTIONS)

    # Tight check vs. a reference that mirrors the kernel's bf16-operand matmuls.
    q_ref_bf16 = reference_forward(state, params, matmul_dtype=jnp.bfloat16)
    assert jnp.allclose(q, q_ref_bf16, rtol=5e-3, atol=5e-3), "mismatch vs bf16-matched reference"

    # Looser check vs. the exact f32 PyTorch-semantics reference (bf16 rounding only).
    q_ref_f32 = reference_forward(state, params, matmul_dtype=jnp.float32)
    assert jnp.allclose(q, q_ref_f32, rtol=3e-2, atol=3e-2), "mismatch vs f32 reference"

    print("KERNEL_OK")
</pallas_src>

<mosaic_0001>
module attributes {stable_mosaic.version = 11 : i64} {
  func.func @kernel(%arg0: i32, %arg1: memref<64x16xf32, #tpu.memory_space<vmem>>, %arg2: memref<16x512xbf16, #tpu.memory_space<vmem>>, %arg3: memref<128x512xbf16, #tpu.memory_space<vmem>>, %arg4: memref<1x512xf32, #tpu.memory_space<vmem>>, %arg5: memref<128x512xbf16, #tpu.memory_space<any>>, %arg6: memref<1x512xf32, #tpu.memory_space<any>>, %arg7: memref<512x128xbf16, #tpu.memory_space<any>>, %arg8: memref<1x128xf32, #tpu.memory_space<any>>, %arg9: memref<8x128xf32, #tpu.memory_space<vmem>>, %arg10: memref<64x512xf32, #tpu.memory_space<vmem>>, %arg11: memref<128x512xbf16, #tpu.memory_space<vmem>>, %arg12: memref<1x512xf32, #tpu.memory_space<vmem>>, %arg13: memref<512x128xbf16, #tpu.memory_space<vmem>>, %arg14: memref<1x128xf32, #tpu.memory_space<vmem>>, %arg15: memref<4x!tpu.dma_semaphore, #tpu.memory_space<semaphore_mem>>) attributes {dimension_semantics = [#tpu.dimension_semantics<arbitrary>], iteration_bounds = array<i64: 1>, scalar_prefetch = 0 : i64, scratch_operands = 6 : i64, tpu.core_type = #tpu.core_type<tc>, window_params = [{pipeline_mode = #tpu.pipeline_mode<synchronous>, transform_indices = @transform_0, window_bounds = array<i64: 64, 16>}, {pipeline_mode = #tpu.pipeline_mode<synchronous>, transform_indices = @transform_1, window_bounds = array<i64: 16, 512>}, {pipeline_mode = #tpu.pipeline_mode<synchronous>, transform_indices = @transform_2, window_bounds = array<i64: 128, 512>}, {pipeline_mode = #tpu.pipeline_mode<synchronous>, transform_indices = @transform_3, window_bounds = array<i64: 1, 512>}, {}, {}, {}, {}, {pipeline_mode = #tpu.pipeline_mode<synchronous>, transform_indices = @transform_8, window_bounds = array<i64: 8, 128>}]} {
    %c0_i32 = arith.constant 0 : i32
    %0 = tpu.memref_slice %arg15[%c0_i32] : memref<4x!tpu.dma_semaphore, #tpu.memory_space<semaphore_mem>> -> memref<1x!tpu.dma_semaphore, #tpu.memory_space<semaphore_mem>>
    %1 = tpu.memref_squeeze %0 : memref<1x!tpu.dma_semaphore, #tpu.memory_space<semaphore_mem>> -> memref<!tpu.dma_semaphore, #tpu.memory_space<semaphore_mem>>
    tpu.enqueue_dma source(%arg5 : memref<128x512xbf16, #tpu.memory_space<any>>) target(%arg11 : memref<128x512xbf16, #tpu.memory_space<vmem>>) target_semaphore(%1 : memref<!tpu.dma_semaphore, #tpu.memory_space<semaphore_mem>>)
    %c1_i32 = arith.constant 1 : i32
    %2 = tpu.memref_slice %arg15[%c1_i32] : memref<4x!tpu.dma_semaphore, #tpu.memory_space<semaphore_mem>> -> memref<1x!tpu.dma_semaphore, #tpu.memory_space<semaphore_mem>>
    %3 = tpu.memref_squeeze %2 : memref<1x!tpu.dma_semaphore, #tpu.memory_space<semaphore_mem>> -> memref<!tpu.dma_semaphore, #tpu.memory_space<semaphore_mem>>
    tpu.enqueue_dma source(%arg6 : memref<1x512xf32, #tpu.memory_space<any>>) target(%arg12 : memref<1x512xf32, #tpu.memory_space<vmem>>) target_semaphore(%3 : memref<!tpu.dma_semaphore, #tpu.memory_space<semaphore_mem>>)
    %c2_i32 = arith.constant 2 : i32
    %4 = tpu.memref_slice %arg15[%c2_i32] : memref<4x!tpu.dma_semaphore, #tpu.memory_space<semaphore_mem>> -> memref<1x!tpu.dma_semaphore, #tpu.memory_space<semaphore_mem>>
    %5 = tpu.memref_squeeze %4 : memref<1x!tpu.dma_semaphore, #tpu.memory_space<semaphore_mem>> -> memref<!tpu.dma_semaphore, #tpu.memory_space<semaphore_mem>>
    tpu.enqueue_dma source(%arg7 : memref<512x128xbf16, #tpu.memory_space<any>>) target(%arg13 : memref<512x128xbf16, #tpu.memory_space<vmem>>) target_semaphore(%5 : memref<!tpu.dma_semaphore, #tpu.memory_space<semaphore_mem>>)
    %c3_i32 = arith.constant 3 : i32
    %6 = tpu.memref_slice %arg15[%c3_i32] : memref<4x!tpu.dma_semaphore, #tpu.memory_space<semaphore_mem>> -> memref<1x!tpu.dma_semaphore, #tpu.memory_space<semaphore_mem>>
    %7 = tpu.memref_squeeze %6 : memref<1x!tpu.dma_semaphore, #tpu.memory_space<semaphore_mem>> -> memref<!tpu.dma_semaphore, #tpu.memory_space<semaphore_mem>>
    tpu.enqueue_dma source(%arg8 : memref<1x128xf32, #tpu.memory_space<any>>) target(%arg14 : memref<1x128xf32, #tpu.memory_space<vmem>>) target_semaphore(%7 : memref<!tpu.dma_semaphore, #tpu.memory_space<semaphore_mem>>)
    %c0 = arith.constant 0 : index
    %c0_0 = arith.constant 0 : index
    %8 = vector.load %arg1[%c0, %c0_0] : memref<64x16xf32, #tpu.memory_space<vmem>>, vector<64x16xf32>
    %9 = arith.truncf %8 : vector<64x16xf32> to vector<64x16xbf16>
    %c0_1 = arith.constant 0 : index
    %c0_2 = arith.constant 0 : index
    %10 = vector.load %arg2[%c0_1, %c0_2] : memref<16x512xbf16, #tpu.memory_space<vmem>>, vector<16x512xbf16>
    %cst = arith.constant dense<0.000000e+00> : vector<64x512xf32>
    %11 = tpu.matmul %9, %10, %cst {dimension_numbers = #tpu.dot_dimension_numbers<[1], [0], [0], [1], [0, 0, 1, 1], [], []>} : vector<64x16xbf16>, vector<16x512xbf16>, vector<64x512xf32> -> vector<64x512xf32>
    %c0_3 = arith.constant 0 : index
    %c0_4 = arith.constant 0 : index
    %12 = vector.load %arg4[%c0_3, %c0_4] : memref<1x512xf32, #tpu.memory_space<vmem>>, vector<1x512xf32>
    %13 = vector.broadcast %12 : vector<1x512xf32> to vector<64x512xf32>
    %14 = arith.addf %11, %13 : vector<64x512xf32>
    %c0_5 = arith.constant 0 : index
    %c0_6 = arith.constant 0 : index
    %15 = vector.load %arg10[%c0_5, %c0_6] : memref<64x512xf32, #tpu.memory_space<vmem>>, vector<64x512xf32>
    tpu.vector_store %arg10[%c0_5, %c0_6], %14 {strides = array<i32>} : memref<64x512xf32, #tpu.memory_space<vmem>>, vector<64x512xf32>,
    %c0_7 = arith.constant 0 : index
    %c0_8 = arith.constant 0 : index
    %16 = vector.load %arg3[%c0_7, %c0_8] : memref<128x512xbf16, #tpu.memory_space<vmem>>, vector<128x512xbf16>
    %cst_9 = arith.constant 0.000000e+00 : f32
    %17 = vector.broadcast %cst_9 : f32 to vector<8x128xf32>
    %cst_10 = arith.constant 0.000000e+00 : f32
    %18 = vector.broadcast %cst_10 : f32 to vector<8x128xf32>
    %c0_11 = arith.constant 0 : index
    %c0_12 = arith.constant 0 : index
    %19 = vector.load %arg10[%c0_11, %c0_12] : memref<64x512xf32, #tpu.memory_space<vmem>>, vector<8x512xf32>
    %20 = arith.truncf %17 : vector<8x128xf32> to vector<8x128xbf16>
    %cst_13 = arith.constant dense<0.000000e+00> : vector<8x512xf32>
    %21 = tpu.matmul %20, %16, %cst_13 {dimension_numbers = #tpu.dot_dimension_numbers<[1], [0], [0], [1], [0, 0, 1, 1], [], []>} : vector<8x128xbf16>, vector<128x512xbf16>, vector<8x512xf32> -> vector<8x512xf32>
    %22 = arith.addf %19, %21 : vector<8x512xf32>
    %23 = vector.extract_strided_slice %22 {offsets = [0, 0], sizes = [8, 384], strides = [1, 1]} : vector<8x512xf32> to vector<8x384xf32>
    %24 = arith.negf %23 : vector<8x384xf32>
    %25 = math.exp %24 : vector<8x384xf32>
    %cst_14 = arith.constant 1.000000e+00 : f32
    %26 = vector.broadcast %cst_14 : f32 to vector<8x384xf32>
    %27 = arith.addf %26, %25 : vector<8x384xf32>
    %28 = arith.divf %26, %27 : vector<8x384xf32>
    %29 = vector.extract_strided_slice %28 {offsets = [0, 0], sizes = [8, 128], strides = [1, 1]} : vector<8x384xf32> to vector<8x128xf32>
    %30 = vector.extract_strided_slice %28 {offsets = [0, 128], sizes = [8, 128], strides = [1, 1]} : vector<8x384xf32> to vector<8x128xf32>
    %31 = vector.extract_strided_slice %28 {offsets = [0, 256], sizes = [8, 128], strides = [1, 1]} : vector<8x384xf32> to vector<8x128xf32>
    %32 = vector.extract_strided_slice %22 {offsets = [0, 384], sizes = [8, 128], strides = [1, 1]} : vector<8x512xf32> to vector<8x128xf32>
    %33 = math.tanh %32 : vector<8x128xf32>
    %34 = arith.mulf %30, %18 : vector<8x128xf32>
    %35 = arith.mulf %29, %33 : vector<8x128xf32>
    %36 = arith.addf %34, %35 : vector<8x128xf32>
    %37 = math.tanh %36 : vector<8x128xf32>
    %38 = arith.mulf %31, %37 : vector<8x128xf32>
    %c8 = arith.constant 8 : index
    %c0_15 = arith.constant 0 : index
    %39 = vector.load %arg10[%c8, %c0_15] : memref<64x512xf32, #tpu.memory_space<vmem>>, vector<8x512xf32>
    %40 = arith.truncf %38 : vector<8x128xf32> to vector<8x128xbf16>
    %cst_16 = arith.constant dense<0.000000e+00> : vector<8x512xf32>
    %41 = tpu.matmul %40, %16, %cst_16 {dimension_numbers = #tpu.dot_dimension_numbers<[1], [0], [0], [1], [0, 0, 1, 1], [], []>} : vector<8x128xbf16>, vector<128x512xbf16>, vector<8x512xf32> -> vector<8x512xf32>
    %42 = arith.addf %39, %41 : vector<8x512xf32>
    %43 = vector.extract_strided_slice %42 {offsets = [0, 0], sizes = [8, 384], strides = [1, 1]} : vector<8x512xf32> to vector<8x384xf32>
    %44 = arith.negf %43 : vector<8x384xf32>
    %45 = math.exp %44 : vector<8x384xf32>
    %cst_17 = arith.constant 1.000000e+00 : f32
    %46 = vector.broadcast %cst_17 : f32 to vector<8x384xf32>
    %47 = arith.addf %46, %45 : vector<8x384xf32>
    %48 = arith.divf %46, %47 : vector<8x384xf32>
    %49 = vector.extract_strided_slice %48 {offsets = [0, 0], sizes = [8, 128], strides = [1, 1]} : vector<8x384xf32> to vector<8x128xf32>
    %50 = vector.extract_strided_slice %48 {offsets = [0, 128], sizes = [8, 128], strides = [1, 1]} : vector<8x384xf32> to vector<8x128xf32>
    %51 = vector.extract_strided_slice %48 {offsets = [0, 256], sizes = [8, 128], strides = [1, 1]} : vector<8x384xf32> to vector<8x128xf32>
    %52 = vector.extract_strided_slice %42 {offsets = [0, 384], sizes = [8, 128], strides = [1, 1]} : vector<8x512xf32> to vector<8x128xf32>
    %53 = math.tanh %52 : vector<8x128xf32>
    %54 = arith.mulf %50, %36 : vector<8x128xf32>
    %55 = arith.mulf %49, %53 : vector<8x128xf32>
    %56 = arith.addf %54, %55 : vector<8x128xf32>
    %57 = math.tanh %56 : vector<8x128xf32>
    %58 = arith.mulf %51, %57 : vector<8x128xf32>
    %c16 = arith.constant 16 : index
    %c0_18 = arith.constant 0 : index
    %59 = vector.load %arg10[%c16, %c0_18] : memref<64x512xf32, #tpu.memory_space<vmem>>, vector<8x512xf32>
    %60 = arith.truncf %58 : vector<8x128xf32> to vector<8x128xbf16>
    %cst_19 = arith.constant dense<0.000000e+00> : vector<8x512xf32>
    %61 = tpu.matmul %60, %16, %cst_19 {dimension_numbers = #tpu.dot_dimension_numbers<[1], [0], [0], [1], [0, 0, 1, 1], [], []>} : vector<8x128xbf16>, vector<128x512xbf16>, vector<8x512xf32> -> vector<8x512xf32>
    %62 = arith.addf %59, %61 : vector<8x512xf32>
    %63 = vector.extract_strided_slice %62 {offsets = [0, 0], sizes = [8, 384], strides = [1, 1]} : vector<8x512xf32> to vector<8x384xf32>
    %64 = arith.negf %63 : vector<8x384xf32>
    %65 = math.exp %64 : vector<8x384xf32>
    %cst_20 = arith.constant 1.000000e+00 : f32
    %66 = vector.broadcast %cst_20 : f32 to vector<8x384xf32>
    %67 = arith.addf %66, %65 : vector<8x384xf32>
    %68 = arith.divf %66, %67 : vector<8x384xf32>
    %69 = vector.extract_strided_slice %68 {offsets = [0, 0], sizes = [8, 128], strides = [1, 1]} : vector<8x384xf32> to vector<8x128xf32>
    %70 = vector.extract_strided_slice %68 {offsets = [0, 128], sizes = [8, 128], strides = [1, 1]} : vector<8x384xf32> to vector<8x128xf32>
    %71 = vector.extract_strided_slice %68 {offsets = [0, 256], sizes = [8, 128], strides = [1, 1]} : vector<8x384xf32> to vector<8x128xf32>
    %72 = vector.extract_strided_slice %62 {offsets = [0, 384], sizes = [8, 128], strides = [1, 1]} : vector<8x512xf32> to vector<8x128xf32>
    %73 = math.tanh %72 : vector<8x128xf32>
    %74 = arith.mulf %70, %56 : vector<8x128xf32>
    %75 = arith.mulf %69, %73 : vector<8x128xf32>
    %76 = arith.addf %74, %75 : vector<8x128xf32>
    %77 = math.tanh %76 : vector<8x128xf32>
    %78 = arith.mulf %71, %77 : vector<8x128xf32>
    %c24 = arith.constant 24 : index
    %c0_21 = arith.constant 0 : index
    %79 = vector.load %arg10[%c24, %c0_21] : memref<64x512xf32, #tpu.memory_space<vmem>>, vector<8x512xf32>
    %80 = arith.truncf %78 : vector<8x128xf32> to vector<8x128xbf16>
    %cst_22 = arith.constant dense<0.000000e+00> : vector<8x512xf32>
    %81 = tpu.matmul %80, %16, %cst_22 {dimension_numbers = #tpu.dot_dimension_numbers<[1], [0], [0], [1], [0, 0, 1, 1], [], []>} : vector<8x128xbf16>, vector<128x512xbf16>, vector<8x512xf32> -> vector<8x512xf32>
    %82 = arith.addf %79, %81 : vector<8x512xf32>
    %83 = vector.extract_strided_slice %82 {offsets = [0, 0], sizes = [8, 384], strides = [1, 1]} : vector<8x512xf32> to vector<8x384xf32>
    %84 = arith.negf %83 : vector<8x384xf32>
    %85 = math.exp %84 : vector<8x384xf32>
    %cst_23 = arith.constant 1.000000e+00 : f32
    %86 = vector.broadcast %cst_23 : f32 to vector<8x384xf32>
    %87 = arith.addf %86, %85 : vector<8x384xf32>
    %88 = arith.divf %86, %87 : vector<8x384xf32>
    %89 = vector.extract_strided_slice %88 {offsets = [0, 0], sizes = [8, 128], strides = [1, 1]} : vector<8x384xf32> to vector<8x128xf32>
    %90 = vector.extract_strided_slice %88 {offsets = [0, 128], sizes = [8, 128], strides = [1, 1]} : vector<8x384xf32> to vector<8x128xf32>
    %91 = vector.extract_strided_slice %88 {offsets = [0, 256], sizes = [8, 128], strides = [1, 1]} : vector<8x384xf32> to vector<8x128xf32>
    %92 = vector.extract_strided_slice %82 {offsets = [0, 384], sizes = [8, 128], strides = [1, 1]} : vector<8x512xf32> to vector<8x128xf32>
    %93 = math.tanh %92 : vector<8x128xf32>
    %94 = arith.mulf %90, %76 : vector<8x128xf32>
    %95 = arith.mulf %89, %93 : vector<8x128xf32>
    %96 = arith.addf %94, %95 : vector<8x128xf32>
    %97 = math.tanh %96 : vector<8x128xf32>
    %98 = arith.mulf %91, %97 : vector<8x128xf32>
    %c32 = arith.constant 32 : index
    %c0_24 = arith.constant 0 : index
    %99 = vector.load %arg10[%c32, %c0_24] : memref<64x512xf32, #tpu.memory_space<vmem>>, vector<8x512xf32>
    %100 = arith.truncf %98 : vector<8x128xf32> to vector<8x128xbf16>
    %cst_25 = arith.constant dense<0.000000e+00> : vector<8x512xf32>
    %101 = tpu.matmul %100, %16, %cst_25 {dimension_numbers = #tpu.dot_dimension_numbers<[1], [0], [0], [1], [0, 0, 1, 1], [], []>} : vector<8x128xbf16>, vector<128x512xbf16>, vector<8x512xf32> -> vector<8x512xf32>
    %102 = arith.addf %99, %101 : vector<8x512xf32>
    %103 = vector.extract_strided_slice %102 {offsets = [0, 0], sizes = [8, 384], strides = [1, 1]} : vector<8x512xf32> to vector<8x384xf32>
    %104 = arith.negf %103 : vector<8x384xf32>
    %105 = math.exp %104 : vector<8x384xf32>
    %cst_26 = arith.constant 1.000000e+00 : f32
    %106 = vector.broadcast %cst_26 : f32 to vector<8x384xf32>
    %107 = arith.addf %106, %105 : vector<8x384xf32>
    %108 = arith.divf %106, %107 : vector<8x384xf32>
    %109 = vector.extract_strided_slice %108 {offsets = [0, 0], sizes = [8, 128], strides = [1, 1]} : vector<8x384xf32> to vector<8x128xf32>
    %110 = vector.extract_strided_slice %108 {offsets = [0, 128], sizes = [8, 128], strides = [1, 1]} : vector<8x384xf32> to vector<8x128xf32>
    %111 = vector.extract_strided_slice %108 {offsets = [0, 256], sizes = [8, 128], strides = [1, 1]} : vector<8x384xf32> to vector<8x128xf32>
    %112 = vector.extract_strided_slice %102 {offsets = [0, 384], sizes = [8, 128], strides = [1, 1]} : vector<8x512xf32> to vector<8x128xf32>
    %113 = math.tanh %112 : vector<8x128xf32>
    %114 = arith.mulf %110, %96 : vector<8x128xf32>
    %115 = arith.mulf %109, %113 : vector<8x128xf32>
    %116 = arith.addf %114, %115 : vector<8x128xf32>
    %117 = math.tanh %116 : vector<8x128xf32>
    %118 = arith.mulf %111, %117 : vector<8x128xf32>
    %c40 = arith.constant 40 : index
    %c0_27 = arith.constant 0 : index
    %119 = vector.load %arg10[%c40, %c0_27] : memref<64x512xf32, #tpu.memory_space<vmem>>, vector<8x512xf32>
    %120 = arith.truncf %118 : vector<8x128xf32> to vector<8x128xbf16>
    %cst_28 = arith.constant dense<0.000000e+00> : vector<8x512xf32>
    %121 = tpu.matmul %120, %16, %cst_28 {dimension_numbers = #tpu.dot_dimension_numbers<[1], [0], [0], [1], [0, 0, 1, 1], [], []>} : vector<8x128xbf16>, vector<128x512xbf16>, vector<8x512xf32> -> vector<8x512xf32>
    %122 = arith.addf %119, %121 : vector<8x512xf32>
    %123 = vector.extract_strided_slice %122 {offsets = [0, 0], sizes = [8, 384], strides = [1, 1]} : vector<8x512xf32> to vector<8x384xf32>
    %124 = arith.negf %123 : vector<8x384xf32>
    %125 = math.exp %124 : vector<8x384xf32>
    %cst_29 = arith.constant 1.000000e+00 : f32
    %126 = vector.broadcast %cst_29 : f32 to vector<8x384xf32>
    %127 = arith.addf %126, %125 : vector<8x384xf32>
    %128 = arith.divf %126, %127 : vector<8x384xf32>
    %129 = vector.extract_strided_slice %128 {offsets = [0, 0], sizes = [8, 128], strides = [1, 1]} : vector<8x384xf32> to vector<8x128xf32>
    %130 = vector.extract_strided_slice %128 {offsets = [0, 128], sizes = [8, 128], strides = [1, 1]} : vector<8x384xf32> to vector<8x128xf32>
    %131 = vector.extract_strided_slice %128 {offsets = [0, 256], sizes = [8, 128], strides = [1, 1]} : vector<8x384xf32> to vector<8x128xf32>
    %132 = vector.extract_strided_slice %122 {offsets = [0, 384], sizes = [8, 128], strides = [1, 1]} : vector<8x512xf32> to vector<8x128xf32>
    %133 = math.tanh %132 : vector<8x128xf32>
    %134 = arith.mulf %130, %116 : vector<8x128xf32>
    %135 = arith.mulf %129, %133 : vector<8x128xf32>
    %136 = arith.addf %134, %135 : vector<8x128xf32>
    %137 = math.tanh %136 : vector<8x128xf32>
    %138 = arith.mulf %131, %137 : vector<8x128xf32>
    %c48 = arith.constant 48 : index
    %c0_30 = arith.constant 0 : index
    %139 = vector.load %arg10[%c48, %c0_30] : memref<64x512xf32, #tpu.memory_space<vmem>>, vector<8x512xf32>
    %140 = arith.truncf %138 : vector<8x128xf32> to vector<8x128xbf16>
    %cst_31 = arith.constant dense<0.000000e+00> : vector<8x512xf32>
    %141 = tpu.matmul %140, %16, %cst_31 {dimension_numbers = #tpu.dot_dimension_numbers<[1], [0], [0], [1], [0, 0, 1, 1], [], []>} : vector<8x128xbf16>, vector<128x512xbf16>, vector<8x512xf32> -> vector<8x512xf32>
    %142 = arith.addf %139, %141 : vector<8x512xf32>
    %143 = vector.extract_strided_slice %142 {offsets = [0, 0], sizes = [8, 384], strides = [1, 1]} : vector<8x512xf32> to vector<8x384xf32>
    %144 = arith.negf %143 : vector<8x384xf32>
    %145 = math.exp %144 : vector<8x384xf32>
    %cst_32 = arith.constant 1.000000e+00 : f32
    %146 = vector.broadcast %cst_32 : f32 to vector<8x384xf32>
    %147 = arith.addf %146, %145 : vector<8x384xf32>
    %148 = arith.divf %146, %147 : vector<8x384xf32>
    %149 = vector.extract_strided_slice %148 {offsets = [0, 0], sizes = [8, 128], strides = [1, 1]} : vector<8x384xf32> to vector<8x128xf32>
    %150 = vector.extract_strided_slice %148 {offsets = [0, 128], sizes = [8, 128], strides = [1, 1]} : vector<8x384xf32> to vector<8x128xf32>
    %151 = vector.extract_strided_slice %148 {offsets = [0, 256], sizes = [8, 128], strides = [1, 1]} : vector<8x384xf32> to vector<8x128xf32>
    %152 = vector.extract_strided_slice %142 {offsets = [0, 384], sizes = [8, 128], strides = [1, 1]} : vector<8x512xf32> to vector<8x128xf32>
    %153 = math.tanh %152 : vector<8x128xf32>
    %154 = arith.mulf %150, %136 : vector<8x128xf32>
    %155 = arith.mulf %149, %153 : vector<8x128xf32>
    %156 = arith.addf %154, %155 : vector<8x128xf32>
    %157 = math.tanh %156 : vector<8x128xf32>
    %158 = arith.mulf %151, %157 : vector<8x128xf32>
    %c56 = arith.constant 56 : index
    %c0_33 = arith.constant 0 : index
    %159 = vector.load %arg10[%c56, %c0_33] : memref<64x512xf32, #tpu.memory_space<vmem>>, vector<8x512xf32>
    %160 = arith.truncf %158 : vector<8x128xf32> to vector<8x128xbf16>
    %cst_34 = arith.constant dense<0.000000e+00> : vector<8x512xf32>
    %161 = tpu.matmul %160, %16, %cst_34 {dimension_numbers = #tpu.dot_dimension_numbers<[1], [0], [0], [1], [0, 0, 1, 1], [], []>} : vector<8x128xbf16>, vector<128x512xbf16>, vector<8x512xf32> -> vector<8x512xf32>
    %162 = arith.addf %159, %161 : vector<8x512xf32>
    %163 = vector.extract_strided_slice %162 {offsets = [0, 0], sizes = [8, 384], strides = [1, 1]} : vector<8x512xf32> to vector<8x384xf32>
    %164 = arith.negf %163 : vector<8x384xf32>
    %165 = math.exp %164 : vector<8x384xf32>
    %cst_35 = arith.constant 1.000000e+00 : f32
    %166 = vector.broadcast %cst_35 : f32 to vector<8x384xf32>
    %167 = arith.addf %166, %165 : vector<8x384xf32>
    %168 = arith.divf %166, %167 : vector<8x384xf32>
    %169 = vector.extract_strided_slice %168 {offsets = [0, 0], sizes = [8, 128], strides = [1, 1]} : vector<8x384xf32> to vector<8x128xf32>
    %170 = vector.extract_strided_slice %168 {offsets = [0, 128], sizes = [8, 128], strides = [1, 1]} : vector<8x384xf32> to vector<8x128xf32>
    %171 = vector.extract_strided_slice %168 {offsets = [0, 256], sizes = [8, 128], strides = [1, 1]} : vector<8x384xf32> to vector<8x128xf32>
    %172 = vector.extract_strided_slice %162 {offsets = [0, 384], sizes = [8, 128], strides = [1, 1]} : vector<8x512xf32> to vector<8x128xf32>
    %173 = math.tanh %172 : vector<8x128xf32>
    %174 = arith.mulf %170, %156 : vector<8x128xf32>
    %175 = arith.mulf %169, %173 : vector<8x128xf32>
    %176 = arith.addf %174, %175 : vector<8x128xf32>
    %177 = math.tanh %176 : vector<8x128xf32>
    %178 = arith.mulf %171, %177 : vector<8x128xf32>
    %c0_i32_36 = arith.constant 0 : i32
    %179 = tpu.memref_slice %arg15[%c0_i32_36] : memref<4x!tpu.dma_semaphore, #tpu.memory_space<semaphore_mem>> -> memref<1x!tpu.dma_semaphore, #tpu.memory_space<semaphore_mem>>
    %180 = tpu.memref_squeeze %179 : memref<1x!tpu.dma_semaphore, #tpu.memory_space<semaphore_mem>> -> memref<!tpu.dma_semaphore, #tpu.memory_space<semaphore_mem>>
    tpu.wait_dma2 semaphore(%180 : memref<!tpu.dma_semaphore, #tpu.memory_space<semaphore_mem>>) src(%arg5 : memref<128x512xbf16, #tpu.memory_space<any>>) dst(%arg11 : memref<128x512xbf16, #tpu.memory_space<vmem>>)
    %c1_i32_37 = arith.constant 1 : i32
    %181 = tpu.memref_slice %arg15[%c1_i32_37] : memref<4x!tpu.dma_semaphore, #tpu.memory_space<semaphore_mem>> -> memref<1x!tpu.dma_semaphore, #tpu.memory_space<semaphore_mem>>
    %182 = tpu.memref_squeeze %181 : memref<1x!tpu.dma_semaphore, #tpu.memory_space<semaphore_mem>> -> memref<!tpu.dma_semaphore, #tpu.memory_space<semaphore_mem>>
    tpu.wait_dma2 semaphore(%182 : memref<!tpu.dma_semaphore, #tpu.memory_space<semaphore_mem>>) src(%arg6 : memref<1x512xf32, #tpu.memory_space<any>>) dst(%arg12 : memref<1x512xf32, #tpu.memory_space<vmem>>)
    %c2_i32_38 = arith.constant 2 : i32
    %183 = tpu.memref_slice %arg15[%c2_i32_38] : memref<4x!tpu.dma_semaphore, #tpu.memory_space<semaphore_mem>> -> memref<1x!tpu.dma_semaphore, #tpu.memory_space<semaphore_mem>>
    %184 = tpu.memref_squeeze %183 : memref<1x!tpu.dma_semaphore, #tpu.memory_space<semaphore_mem>> -> memref<!tpu.dma_semaphore, #tpu.memory_space<semaphore_mem>>
    tpu.wait_dma2 semaphore(%184 : memref<!tpu.dma_semaphore, #tpu.memory_space<semaphore_mem>>) src(%arg7 : memref<512x128xbf16, #tpu.memory_space<any>>) dst(%arg13 : memref<512x128xbf16, #tpu.memory_space<vmem>>)
    %c3_i32_39 = arith.constant 3 : i32
    %185 = tpu.memref_slice %arg15[%c3_i32_39] : memref<4x!tpu.dma_semaphore, #tpu.memory_space<semaphore_mem>> -> memref<1x!tpu.dma_semaphore, #tpu.memory_space<semaphore_mem>>
    %186 = tpu.memref_squeeze %185 : memref<1x!tpu.dma_semaphore, #tpu.memory_space<semaphore_mem>> -> memref<!tpu.dma_semaphore, #tpu.memory_space<semaphore_mem>>
    tpu.wait_dma2 semaphore(%186 : memref<!tpu.dma_semaphore, #tpu.memory_space<semaphore_mem>>) src(%arg8 : memref<1x128xf32, #tpu.memory_space<any>>) dst(%arg14 : memref<1x128xf32, #tpu.memory_space<vmem>>)
    %187 = arith.truncf %178 : vector<8x128xf32> to vector<8x128xbf16>
    %c0_40 = arith.constant 0 : index
    %c0_41 = arith.constant 0 : index
    %188 = vector.load %arg11[%c0_40, %c0_41] : memref<128x512xbf16, #tpu.memory_space<vmem>>, vector<128x512xbf16>
    %cst_42 = arith.constant dense<0.000000e+00> : vector<8x512xf32>
    %189 = tpu.matmul %187, %188, %cst_42 {dimension_numbers = #tpu.dot_dimension_numbers<[1], [0], [0], [1], [0, 0, 1, 1], [], []>} : vector<8x128xbf16>, vector<128x512xbf16>, vector<8x512xf32> -> vector<8x512xf32>
    %c0_43 = arith.constant 0 : index
    %c0_44 = arith.constant 0 : index
    %190 = vector.load %arg12[%c0_43, %c0_44] : memref<1x512xf32, #tpu.memory_space<vmem>>, vector<1x512xf32>
    %191 = vector.broadcast %190 : vector<1x512xf32> to vector<8x512xf32>
    %192 = arith.addf %189, %191 : vector<8x512xf32>
    %cst_45 = arith.constant 0.000000e+00 : f32
    %193 = vector.broadcast %cst_45 : f32 to vector<8x512xf32>
    %194 = arith.maximumf %192, %193 : vector<8x512xf32>
    %195 = arith.truncf %194 : vector<8x512xf32> to vector<8x512xbf16>
    %c0_46 = arith.constant 0 : index
    %c0_47 = arith.constant 0 : index
    %196 = vector.load %arg13[%c0_46, %c0_47] : memref<512x128xbf16, #tpu.memory_space<vmem>>, vector<512x128xbf16>
    %cst_48 = arith.constant dense<0.000000e+00> : vector<8x128xf32>
    %197 = tpu.matmul %195, %196, %cst_48 {dimension_numbers = #tpu.dot_dimension_numbers<[1], [0], [0], [1], [0, 0, 1, 1], [], []>} : vector<8x512xbf16>, vector<512x128xbf16>, vector<8x128xf32> -> vector<8x128xf32>
    %c0_49 = arith.constant 0 : index
    %c0_50 = arith.constant 0 : index
    %198 = vector.load %arg14[%c0_49, %c0_50] : memref<1x128xf32, #tpu.memory_space<vmem>>, vector<1x128xf32>
    %199 = vector.broadcast %198 : vector<1x128xf32> to vector<8x128xf32>
    %200 = arith.addf %197, %199 : vector<8x128xf32>
    %c0_51 = arith.constant 0 : index
    %c0_52 = arith.constant 0 : index
    %201 = vector.load %arg9[%c0_51, %c0_52] : memref<8x128xf32, #tpu.memory_space<vmem>>, vector<8x128xf32>
    tpu.vector_store %arg9[%c0_51, %c0_52], %200 {strides = array<i32>} : memref<8x128xf32, #tpu.memory_space<vmem>>, vector<8x128xf32>,
    return
  }
  func.func @transform_0(%arg0: i32) -> (i32, i32) {
    %c0_i32 = arith.constant 0 : i32
    %c0_i32_0 = arith.constant 0 : i32
    %c0_i32_1 = arith.constant 0 : i32
    return %c0_i32, %c0_i32_0 : i32, i32
  }
  func.func @transform_1(%arg0: i32) -> (i32, i32) {
    %c0_i32 = arith.constant 0 : i32
    %c0_i32_0 = arith.constant 0 : i32
    %c0_i32_1 = arith.constant 0 : i32
    return %c0_i32, %c0_i32_0 : i32, i32
  }
  func.func @transform_2(%arg0: i32) -> (i32, i32) {
    %c0_i32 = arith.constant 0 : i32
    %c0_i32_0 = arith.constant 0 : i32
    %c0_i32_1 = arith.constant 0 : i32
    return %c0_i32, %c0_i32_0 : i32, i32
  }
  func.func @transform_3(%arg0: i32) -> (i32, i32) {
    %c0_i32 = arith.constant 0 : i32
    %c0_i32_0 = arith.constant 0 : i32
    %c0_i32_1 = arith.constant 0 : i32
    return %c0_i32, %c0_i32_0 : i32, i32
  }
  func.func @transform_8(%arg0: i32) -> (i32, i32) {
    %c0_i32 = arith.constant 0 : i32
    %c0_i32_0 = arith.constant 0 : i32
    %c0_i32_1 = arith.constant 0 : i32
    return %c0_i32, %c0_i32_0 : i32, i32
  }
}

</mosaic_0001>

<llo_original>
// kernel: tpu_custom_call.1
$region0: #{tpu_custom_call.1}
  #allocation0 [shape = 'u32[]', space=smem, size = 0x4, offset = 0x4, fixed_abs, tag = 'smem constant byte address 0x4 - core index']
  #allocation1 [shape = 'u32[144,128]{1,0:T(1,128)}', space=vmem, size = 0x12000, scoped, tag = 'internal scratch']
  #allocation2 [shape = 'f32[64,512]{1,0:T(8,128)}', space=vmem, size = 0x20000, scoped, tag = 'scratch operand']
  #allocation3 [shape = 'bf16[128,512]{1,0:T(16,128)(2,1)}', space=vmem, size = 0x20000, scoped, tag = 'scratch operand']
  #allocation4 [shape = 'f32[1,512]{1,0:T(1,128)}', space=vmem, size = 0x800, scoped, tag = 'scratch operand']
  #allocation5 [shape = 'bf16[512,128]{1,0:T(16,128)(2,1)}', space=vmem, size = 0x20000, scoped, tag = 'scratch operand']
  #allocation6 [shape = 'f32[1,128]{1,0:T(1,128)}', space=vmem, size = 0x200, scoped, tag = 'scratch operand']
  #allocation7 [shape = 's32[4]{0}', space=sflag, size = 0x10, scoped, tag = 'scratch operand']
  #allocation12 [shape = 's32[]', space=sflag, size = 0x4, offset = 0, fixed_abs, tag = 'sflag constant byte address 0x0 - dummy sync flag']
  #allocation14 [shape = 's32[]', space=sflag, size = 0x4, offset = 0, fixed_abs, tag = 'sflag constant byte address 0x0 - dummy sync flag']
  #allocation15 [shape = 's32[]', space=sflag, size = 0x4, offset = 0, fixed_abs, tag = 'sflag constant byte address 0x0 - dummy sync flag']
  #allocation16 [shape = 's32[]', space=sflag, size = 0x4, offset = 0, fixed_abs, tag = 'sflag constant byte address 0x0 - dummy sync flag']
  #allocation17 [shape = 'u32[]', space=smem, size = 0x4, offset = 0x44, fixed_abs, tag = 'smem constant byte address 0x44 - assertion arg 0']
  #allocation18 [shape = 'u32[]', space=smem, size = 0x4, offset = 0x48, fixed_abs, tag = 'smem constant byte address 0x48 - assertion arg 1']
  #allocation19 [shape = 's32[]', space=sflag, size = 0x4, offset = 0, fixed_abs, tag = 'sflag constant byte address 0x0 - dummy sync flag']
  %s0 = inlined_call_operand.vmem [shape: f32[64,16], index: 0, kind: input, shape index: {}]
  %s1 = inlined_call_operand.vmem [shape: bf16[16,512], index: 1, kind: input, shape index: {}]
  %s2 = inlined_call_operand.hbm [shape: bf16[128,512], index: 2, kind: input, shape index: {}]
  %s3 = inlined_call_operand.vmem [shape: f32[1,512], index: 3, kind: input, shape index: {}]
  %s4 = inlined_call_operand.hbm [shape: bf16[128,512], index: 4, kind: input, shape index: {}]
  %s5 = inlined_call_operand.vmem [shape: f32[1,512], index: 5, kind: input, shape index: {}]
  %s6 = inlined_call_operand.hbm [shape: bf16[512,128], index: 6, kind: input, shape index: {}]
  %s7 = inlined_call_operand.vmem [shape: f32[1,128], index: 7, kind: input, shape index: {}]
  %s8 = inlined_call_operand.hbm [shape: f32[8,128], index: 8, kind: output, shape index: {}]
  %s9 = sld [smem:[#allocation0]]
  $region94: #{tpu_custom_call.1} parent=0
    _
  %s11 = ssub.s32 1, %s9
  %s12 = scalar_select 0, %s11, %s9
  $region1: #{tpu_custom_call.1} parent=0
    #allocation8 [shape = 'u8[131072]{0}', space=vmem, size = 0x20000, scoped, tag = 'input window, operand 2, single buffered']
    #allocation9 [shape = 's32[1]{0}', space=sflag, size = 0x4, scoped, tag = 'scoped memory for tpu_custom_call.1']
    #allocation10 [shape = 's32[1]{0}', space=sflag, size = 0x4, scoped, tag = 'scoped memory for tpu_custom_call.1']
    #allocation11 [shape = 'u8[4096]{0}', space=vmem, size = 0x1000, scoped, tag = 'output window, operand 0, single buffered']
    #allocation13 [shape = 'u32[9]{0}', space=smem, size = 0x24, scoped, tag = 'DMA stride descriptor']
    %13 = vsyncpa [#allocation9], 0
    %14 = vsyncpa [#allocation10], 0
    // Predicated region
    $region2: #{tpu_custom_call.1} parent=1 // pred_check
      _
    $region3: #{tpu_custom_call.1} parent=1 // pred_check_branch
      %16 = sbr.rel (0) target = $region5
    $region4: #{tpu_custom_call.1} parent=1 // pred_region
      _
    $region5: #{tpu_custom_call.1} parent=1 // pred_fallthru
      _
    // Predicated region
    $region6: #{tpu_custom_call.1} parent=1 // pred_check
      _
    $region7: #{tpu_custom_call.1} parent=1 // pred_check_branch
      %18 = sbr.rel (0) target = $region9
    $region8: #{tpu_custom_call.1} parent=1 // pred_region
      _
    $region9: #{tpu_custom_call.1} parent=1 // pred_fallthru
      _
    // Predicated region
    $region10: #{tpu_custom_call.1} parent=1 // pred_check
      _
    $region11: #{tpu_custom_call.1} parent=1 // pred_check_branch
      %20 = sbr.rel (0) target = $region13
    $region12: #{tpu_custom_call.1} parent=1 // pred_region
      %s22 = ssub.s32 4096, 4096
      %23 = vsyncadd [#allocation9], %s22
      %s24 = sshll.u32 [#allocation8], 4
      %s25 = int_to_ptr.vmem [resolvable:$true] %s24
      %30 = dma.hbm_to_vmem [thread:$0]  %s2, 4096, %s25, [#allocation9], 256, 256, 16
    $region13: #{tpu_custom_call.1} parent=1 // pred_fallthru
      _
    // Predicated region
    $region14: #{tpu_custom_call.1} parent=1 // pred_check
      _
    $region15: #{tpu_custom_call.1} parent=1 // pred_check_branch
      %32 = sbr.rel (0) target = $region17
    $region16: #{tpu_custom_call.1} parent=1 // pred_region
      _
    $region17: #{tpu_custom_call.1} parent=1 // pred_fallthru
      _
    // Predicated region
    $region18: #{tpu_custom_call.1} parent=1 // pred_check
      _
    $region19: #{tpu_custom_call.1} parent=1 // pred_check_branch
      %34 = sbr.rel (0) target = $region21
    $region20: #{tpu_custom_call.1} parent=1 // pred_region
      %35 = dma.done [#allocation9], 4096
    $region21: #{tpu_custom_call.1} parent=1 // pred_fallthru
      _
    %s38 = sshll.u32 1, 14
    %s39 = sxor.u32 4294967295, %s38
    %s41 = sld [smem:[#allocation0]]
    %s42 = sadd.s32 2, %s41
    %s44 = sshll.u32 7, 26
    %s45 = sxor.u32 4294967295, %s44
    %s46 = sand.u32 0, %s45
    %s47 = sshll.u32 %s42, 26
    %s48 = sor.u32 %s46, %s47
    %s49 = sshll.u32 [#allocation3], 4
    %s50 = int_to_ptr.vmem [resolvable:$true] %s49
    %53 = sst [smem:[#allocation13]] 512
    %s54 = scalar_lea.smem [#allocation13], 1
    %55 = sst [smem:[%s54]] 512
    %s56 = scalar_lea.smem [#allocation13], 2
    %57 = sst [smem:[%s56]] 4
    %s58 = scalar_lea.smem [#allocation13], 3
    %59 = sst [smem:[%s58]] 64
    %s60 = scalar_lea.smem [#allocation13], 4
    %61 = sst [smem:[%s60]] 128
    %s62 = scalar_lea.smem [#allocation13], 5
    %63 = sst [smem:[%s62]] 2
    %s64 = scalar_lea.smem [#allocation13], 6
    %65 = sst [smem:[%s64]] 256
    %s66 = scalar_lea.smem [#allocation13], 7
    %67 = sst [smem:[%s66]] 64
    %s68 = scalar_lea.smem [#allocation13], 8
    %69 = sst [smem:[%s68]] 4
    %71 = dma.general %s4, 4096, %s50, [#allocation7], [#allocation12], [#allocation13], %s48, 0
    %s72 = scalar_lea.sflag [#allocation7], 1
    %p74 = scmp.lt.u32.totalorder 4, 8
    %p75 = pneg %p74
    // Predicated region
    $region22: #{tpu_custom_call.1} parent=1 // pred_check
      _
    $region23: #{tpu_custom_call.1} parent=1 // pred_check_branch
      %77 = sbr.rel (%p74) target = $region25
    $region24: #{tpu_custom_call.1} parent=1 // pred_region
      %s92 = sand.u32 4, 7
      %p93 = scmp.eq.s32.totalorder %s92, 0
      %p94 = pneg %p93
      // Predicated region
      $region37: #{tpu_custom_call.1} parent=24 // pred_check
        _
      $region38: #{tpu_custom_call.1} parent=24 // pred_check_branch
        %96 = sbr.rel (%p93) target = $region40
      $region39: #{tpu_custom_call.1} parent=24 // pred_region
        %s97 = sand.u32 4, 7
        %s98 = ssub.s32 4, %s97
        %s99 = scalar_lea.vmem %s5, %s98
        %s100 = ssub.s32 4, %s97
        %s101 = scalar_lea.vmem [#allocation4], %s100
        %s102 = sshllo.u32 0, %s97
        loop: start=0, step=1, limit=1
        $region41: #{tpu_custom_call.1} parent=39 // loop_pre_header
          _
        $region42: #{tpu_custom_call.1} parent=39 // loop_header
          %s104 = sphi 0, %s108
          %p105 = scmp.ge.s32.totalorder %s104, 1
          %s109 = sphi %s99, %s99
          %s110 = sphi %s101, %s101
        $region43: #{tpu_custom_call.1} parent=39 // loop_header_branch
          %107 = sbr.rel (%p105) target = $region47
        $region44: #{tpu_custom_call.1} parent=39 // loop_body
          %v111 = vld [vmem:[%s109] sm:%s102]
          %112 = vst [vmem:[%s110] sm:%s102] %v111
        $region45: #{tpu_custom_call.1} parent=39 // loop_footer
          %s108 = sadd.s32 1, %s104
        $region46: #{tpu_custom_call.1} parent=39 // loop_footer_branch
          %103 = sbr.rel target = $region42
        $region47: #{tpu_custom_call.1} parent=39 // loop_exit
          _
      $region40: #{tpu_custom_call.1} parent=24 // pred_fallthru
        _
    $region25: #{tpu_custom_call.1} parent=1 // pred_fallthru
      _
    // Predicated region
    $region26: #{tpu_custom_call.1} parent=1 // pred_check
      %p78 = pneg %p74
    $region27: #{tpu_custom_call.1} parent=1 // pred_check_branch
      %80 = sbr.rel (%p78) target = $region29
    $region28: #{tpu_custom_call.1} parent=1 // pred_region
      %s81 = sshllo.u32 0, 4
      loop: start=0, step=1, limit=1
      $region30: #{tpu_custom_call.1} parent=28 // loop_pre_header
        _
      $region31: #{tpu_custom_call.1} parent=28 // loop_header
        %s83 = sphi 0, %s87
        %p84 = scmp.ge.s32.totalorder %s83, 1
        %s88 = sphi %s5, %s5
        %s89 = sphi [#allocation4], [#allocation4]
      $region32: #{tpu_custom_call.1} parent=28 // loop_header_branch
        %86 = sbr.rel (%p84) target = $region36
      $region33: #{tpu_custom_call.1} parent=28 // loop_body
        %v90 = vld [vmem:[%s88] sm:%s81]
        %91 = vst [vmem:[%s89] sm:%s81] %v90
      $region34: #{tpu_custom_call.1} parent=28 // loop_footer
        %s87 = sadd.s32 1, %s83
      $region35: #{tpu_custom_call.1} parent=28 // loop_footer_branch
        %82 = sbr.rel target = $region31
      $region36: #{tpu_custom_call.1} parent=28 // loop_exit
        _
    $region29: #{tpu_custom_call.1} parent=1 // pred_fallthru
      _
    // Predicated region
    $region48: #{tpu_custom_call.1} parent=1 // pred_check
      _
    $region49: #{tpu_custom_call.1} parent=1 // pred_check_branch
      %115 = sbr.rel (0) target = $region51
    $region50: #{tpu_custom_call.1} parent=1 // pred_region
      %116 = vsyncadd %s72, 64
    $region51: #{tpu_custom_call.1} parent=1 // pred_fallthru
      _
    %s117 = scalar_lea.sflag [#allocation7], 2
    // Predicated region
    $region52: #{tpu_custom_call.1} parent=1 // pred_check
      _
    $region53: #{tpu_custom_call.1} parent=1 // pred_check_branch
      %119 = sbr.rel target = $region55
    $region54: #{tpu_custom_call.1} parent=1 // pred_region
      %120 = sst [smem:[#allocation17]] [#allocation16]
      %121 = sst [smem:[#allocation18]] [#allocation15]
    $region55: #{tpu_custom_call.1} parent=1 // pred_fallthru
      _
    %123 = shalt.err (0)
    %s125 = sshll.u32 [#allocation5], 4
    %s126 = int_to_ptr.vmem [resolvable:$true] %s125
    %128 = dma.hbm_to_vmem [thread:$0]  %s6, 4096, %s126, %s117
    %s129 = scalar_lea.sflag [#allocation7], 3
    %p131 = scmp.lt.u32.totalorder 1, 8
    %p132 = pneg %p131
    // Predicated region
    $region56: #{tpu_custom_call.1} parent=1 // pred_check
      _
    $region57: #{tpu_custom_call.1} parent=1 // pred_check_branch
      %134 = sbr.rel (%p131) target = $region59
    $region58: #{tpu_custom_call.1} parent=1 // pred_region
      %s149 = sand.u32 1, 7
      %p150 = scmp.eq.s32.totalorder %s149, 0
      %p151 = pneg %p150
      // Predicated region
      $region71: #{tpu_custom_call.1} parent=58 // pred_check
        _
      $region72: #{tpu_custom_call.1} parent=58 // pred_check_branch
        %153 = sbr.rel (%p150) target = $region74
      $region73: #{tpu_custom_call.1} parent=58 // pred_region
        %s154 = sand.u32 1, 7
        %s155 = ssub.s32 1, %s154
        %s156 = scalar_lea.vmem %s7, %s155
        %s157 = ssub.s32 1, %s154
        %s158 = scalar_lea.vmem [#allocation6], %s157
        %s159 = sshllo.u32 0, %s154
        loop: start=0, step=1, limit=1
        $region75: #{tpu_custom_call.1} parent=73 // loop_pre_header
          _
        $region76: #{tpu_custom_call.1} parent=73 // loop_header
          %s161 = sphi 0, %s165
          %p162 = scmp.ge.s32.totalorder %s161, 1
          %s166 = sphi %s156, %s156
          %s167 = sphi %s158, %s158
        $region77: #{tpu_custom_call.1} parent=73 // loop_header_branch
          %164 = sbr.rel (%p162) target = $region81
        $region78: #{tpu_custom_call.1} parent=73 // loop_body
          %v168 = vld [vmem:[%s166] sm:%s159]
          %169 = vst [vmem:[%s167] sm:%s159] %v168
        $region79: #{tpu_custom_call.1} parent=73 // loop_footer
          %s165 = sadd.s32 1, %s161
        $region80: #{tpu_custom_call.1} parent=73 // loop_footer_branch
          %160 = sbr.rel target = $region76
        $region81: #{tpu_custom_call.1} parent=73 // loop_exit
          _
      $region74: #{tpu_custom_call.1} parent=58 // pred_fallthru
        _
    $region59: #{tpu_custom_call.1} parent=1 // pred_fallthru
      _
    // Predicated region
    $region60: #{tpu_custom_call.1} parent=1 // pred_check
      %p135 = pneg %p131
    $region61: #{tpu_custom_call.1} parent=1 // pred_check_branch
      %137 = sbr.rel (%p135) target = $region63
    $region62: #{tpu_custom_call.1} parent=1 // pred_region
      %s138 = sshllo.u32 0, 1
      loop: start=0, step=1, limit=1
      $region64: #{tpu_custom_call.1} parent=62 // loop_pre_header
        _
      $region65: #{tpu_custom_call.1} parent=62 // loop_header
        %s140 = sphi 0, %s144
        %p141 = scmp.ge.s32.totalorder %s140, 1
        %s145 = sphi %s7, %s7
        %s146 = sphi [#allocation6], [#allocation6]
      $region66: #{tpu_custom_call.1} parent=62 // loop_header_branch
        %143 = sbr.rel (%p141) target = $region70
      $region67: #{tpu_custom_call.1} parent=62 // loop_body
        %v147 = vld [vmem:[%s145] sm:%s138]
        %148 = vst [vmem:[%s146] sm:%s138] %v147
      $region68: #{tpu_custom_call.1} parent=62 // loop_footer
        %s144 = sadd.s32 1, %s140
      $region69: #{tpu_custom_call.1} parent=62 // loop_footer_branch
        %139 = sbr.rel target = $region65
      $region70: #{tpu_custom_call.1} parent=62 // loop_exit
        _
    $region63: #{tpu_custom_call.1} parent=1 // pred_fallthru
      _
    // Predicated region
    $region82: #{tpu_custom_call.1} parent=1 // pred_check
      _
    $region83: #{tpu_custom_call.1} parent=1 // pred_check_branch
      %172 = sbr.rel (0) target = $region85
    $region84: #{tpu_custom_call.1} parent=1 // pred_region
      %173 = vsyncadd %s129, 16
    $region85: #{tpu_custom_call.1} parent=1 // pred_fallthru
      _
    %v174 = vld [vmem:[%s0] sm:$0xff]
    %v175 = vld [vmem:[%s0 + $0x8] sm:$0xff]
    %v176 = vld [vmem:[%s0 + $0x10] sm:$0xff]
    %v177 = vld [vmem:[%s0 + $0x18] sm:$0xff]
    %v178 = vld [vmem:[%s0 + $0x20] sm:$0xff]
    %v179 = vld [vmem:[%s0 + $0x28] sm:$0xff]
    %v180 = vld [vmem:[%s0 + $0x30] sm:$0xff]
    %v181 = vld [vmem:[%s0 + $0x38] sm:$0xff]
    %v182 = vpack.c.bf16 %v175, %v174
    %v183 = vpack.c.bf16 %v177, %v176
    %v184 = vpack.c.bf16 %v179, %v178
    %v185 = vpack.c.bf16 %v181, %v180
    %v186 = vld [vmem:[%s1] sm:$0xff]
    %v187 = vld [vmem:[%s1 + $0x8] sm:$0xff]
    %v188 = vld [vmem:[%s1 + $0x10] sm:$0xff]
    %v189 = vld [vmem:[%s1 + $0x18] sm:$0xff]
    %v190 = vld [vmem:[%s3] sm:$0xf]
    %v192 = vlaneseq
    %v193 = vshrl.u32 %v192, 7
    %v194 = vsub.s32 0, %v193
    %v195 = vrot.slane %v190, %v194
    %v196 = vlaneseq
    %v197 = vshrl.u32 %v196, 7
    %v198 = vsub.s32 1, %v197
    %v199 = vrot.slane %v190, %v198
    %v200 = vlaneseq
    %v201 = vshrl.u32 %v200, 7
    %v202 = vsub.s32 2, %v201
    %v203 = vrot.slane %v190, %v202
    %v204 = vlaneseq
    %v205 = vshrl.u32 %v204, 7
    %v206 = vsub.s32 3, %v205
    %v207 = vrot.slane %v190, %v206
    %v216 = vunpack.c.l.b16 %v186
    %v217 = vunpack.c.h.b16 %v186
    %v218 = vunpack.c.l.b16 %v187
    %v219 = vunpack.c.h.b16 %v187
    %v220 = vunpack.c.l.b16 %v188
    %v221 = vunpack.c.h.b16 %v188
    %v222 = vunpack.c.l.b16 %v189
    %v223 = vunpack.c.h.b16 %v189
    %v224 = vpack.c.b16 %v220, %v216
    %v225 = vpack.c.b16 %v221, %v217
    %v226 = vpack.c.b16 %v222, %v218
    %v227 = vpack.c.b16 %v223, %v219
    %vm232 = vcmask 130048
    %v234 = vsel %vm232, %v182, 0
    %v237 = vsel %vm232, %v183, 0
    %v240 = vsel %vm232, %v184, 0
    %v243 = vsel %vm232, %v185, 0
    %245 = vmatprep.subr.bf16.mxu0 %v225
    %246 = vmatpush1.bf16.msra.mxu0 %v224
    %247 = vmatprep.subr.bf16.mxu0 0
    %248 = vmatpush1.bf16.msra.mxu0 0
    %249 = vmatprep.subr.bf16.mxu0 0
    %250 = vmatpush1.bf16.msra.mxu0 0
    %251 = vmatprep.subr.bf16.mxu0 0
    %252 = vmatpush1.bf16.msra.mxu0 0
    %253 = vmatprep.subr.bf16.mxu0 0
    %254 = vmatpush1.bf16.msra.mxu0 0
    %255 = vmatprep.subr.bf16.mxu0 0
    %256 = vmatpush1.bf16.msra.mxu0 0
    %257 = vmatprep.subr.bf16.mxu0 0
    %258 = vmatpush1.bf16.msra.mxu0 0
    %259 = vmatprep.subr.bf16.mxu0 0
    %260 = vmatpush1.bf16.msra.mxu0 0
    %261 = vmatprep.subr.bf16.mxu0 0
    %262 = vmatpush1.bf16.msra.mxu0 0
    %263 = vmatprep.subr.bf16.mxu0 0
    %264 = vmatpush1.bf16.msra.mxu0 0
    %265 = vmatprep.subr.bf16.mxu0 0
    %266 = vmatpush1.bf16.msra.mxu0 0
    %267 = vmatprep.subr.bf16.mxu0 0
    %268 = vmatpush1.bf16.msra.mxu0 0
    %269 = vmatprep.subr.bf16.mxu0 0
    %270 = vmatpush1.bf16.msra.mxu0 0
    %271 = vmatprep.subr.bf16.mxu0 0
    %272 = vmatpush1.bf16.msra.mxu0 0
    %273 = vmatprep.subr.bf16.mxu0 0
    %274 = vmatpush1.bf16.msra.mxu0 0
    %275 = vmatprep.subr.bf16.mxu0 0
    %276 = vmatpush1.bf16.msra.mxu0 0
    %277 = vmatprep.mubr.bf16.mxu0 0
    %278 = vmatmul.mubr.bf16.gmra.mrb[0].mxu0 %v234
    %v279 = vpop.f32.mrb[0].mxu0
    %v280 = vadd.f32 %v195, %v279
    %v281 = vpop.f32.mrb[0].mxu0
    %v282 = vadd.f32 %v199, %v281
    %v283 = vpop.f32.mrb[0].mxu0
    %v284 = vadd.f32 %v195, %v283
    %v285 = vpop.f32.mrb[0].mxu0
    %v286 = vadd.f32 %v199, %v285
    %287 = vmatprep.mubr.bf16.mxu0 0
    %288 = vmatmul.mubr.bf16.gmra.mrb[0].mxu0 %v237
    %v289 = vpop.f32.mrb[0].mxu0
    %v290 = vadd.f32 %v195, %v289
    %v291 = vpop.f32.mrb[0].mxu0
    %v292 = vadd.f32 %v199, %v291
    %v293 = vpop.f32.mrb[0].mxu0
    %v294 = vadd.f32 %v195, %v293
    %v295 = vpop.f32.mrb[0].mxu0
    %v296 = vadd.f32 %v199, %v295
    %297 = vmatprep.mubr.bf16.mxu0 0
    %298 = vmatmul.mubr.bf16.gmra.mrb[0].mxu0 %v240
    %v299 = vpop.f32.mrb[0].mxu0
    %v300 = vadd.f32 %v195, %v299
    %v301 = vpop.f32.mrb[0].mxu0
    %v302 = vadd.f32 %v199, %v301
    %v303 = vpop.f32.mrb[0].mxu0
    %v304 = vadd.f32 %v195, %v303
    %v305 = vpop.f32.mrb[0].mxu0
    %v306 = vadd.f32 %v199, %v305
    %307 = vmatprep.mubr.bf16.mxu0 0
    %308 = vmatmul.mubr.bf16.gmra.mrb[0].mxu0 %v243
    %v309 = vpop.f32.mrb[0].mxu0
    %v310 = vadd.f32 %v195, %v309
    %v311 = vpop.f32.mrb[0].mxu0
    %v312 = vadd.f32 %v199, %v311
    %v313 = vpop.f32.mrb[0].mxu0
    %v314 = vadd.f32 %v195, %v313
    %v315 = vpop.f32.mrb[0].mxu0
    %v316 = vadd.f32 %v199, %v315
    %317 = vdwg.mxu0
    %318 = vmatprep.subr.bf16.mxu0 %v227
    %319 = vmatpush1.bf16.msra.mxu0 %v226
    %320 = vmatprep.subr.bf16.mxu0 0
    %321 = vmatpush1.bf16.msra.mxu0 0
    %322 = vmatprep.subr.bf16.mxu0 0
    %323 = vmatpush1.bf16.msra.mxu0 0
    %324 = vmatprep.subr.bf16.mxu0 0
    %325 = vmatpush1.bf16.msra.mxu0 0
    %326 = vmatprep.subr.bf16.mxu0 0
    %327 = vmatpush1.bf16.msra.mxu0 0
    %328 = vmatprep.subr.bf16.mxu0 0
    %329 = vmatpush1.bf16.msra.mxu0 0
    %330 = vmatprep.subr.bf16.mxu0 0
    %331 = vmatpush1.bf16.msra.mxu0 0
    %332 = vmatprep.subr.bf16.mxu0 0
    %333 = vmatpush1.bf16.msra.mxu0 0
    %334 = vmatprep.subr.bf16.mxu0 0
    %335 = vmatpush1.bf16.msra.mxu0 0
    %336 = vmatprep.subr.bf16.mxu0 0
    %337 = vmatpush1.bf16.msra.mxu0 0
    %338 = vmatprep.subr.bf16.mxu0 0
    %339 = vmatpush1.bf16.msra.mxu0 0
    %340 = vmatprep.subr.bf16.mxu0 0
    %341 = vmatpush1.bf16.msra.mxu0 0
    %342 = vmatprep.subr.bf16.mxu0 0
    %343 = vmatpush1.bf16.msra.mxu0 0
    %344 = vmatprep.subr.bf16.mxu0 0
    %345 = vmatpush1.bf16.msra.mxu0 0
    %346 = vmatprep.subr.bf16.mxu0 0
    %347 = vmatpush1.bf16.msra.mxu0 0
    %348 = vmatprep.subr.bf16.mxu0 0
    %349 = vmatpush1.bf16.msra.mxu0 0
    %350 = vmatprep.mubr.bf16.mxu0 0
    %351 = vmatmul.mubr.bf16.gmra.mrb[0].mxu0 %v234
    %v352 = vpop.f32.mrb[0].mxu0
    %v353 = vadd.f32 %v203, %v352
    %v354 = vpop.f32.mrb[0].mxu0
    %v355 = vadd.f32 %v207, %v354
    %v356 = vpop.f32.mrb[0].mxu0
    %v357 = vadd.f32 %v203, %v356
    %v358 = vpop.f32.mrb[0].mxu0
    %v359 = vadd.f32 %v207, %v358
    %360 = vmatprep.mubr.bf16.mxu0 0
    %361 = vmatmul.mubr.bf16.gmra.mrb[0].mxu0 %v237
    %v362 = vpop.f32.mrb[0].mxu0
    %v363 = vadd.f32 %v203, %v362
    %v364 = vpop.f32.mrb[0].mxu0
    %v365 = vadd.f32 %v207, %v364
    %v366 = vpop.f32.mrb[0].mxu0
    %v367 = vadd.f32 %v203, %v366
    %v368 = vpop.f32.mrb[0].mxu0
    %v369 = vadd.f32 %v207, %v368
    %370 = vmatprep.mubr.bf16.mxu0 0
    %371 = vmatmul.mubr.bf16.gmra.mrb[0].mxu0 %v240
    %v372 = vpop.f32.mrb[0].mxu0
    %v373 = vadd.f32 %v203, %v372
    %v374 = vpop.f32.mrb[0].mxu0
    %v375 = vadd.f32 %v207, %v374
    %v376 = vpop.f32.mrb[0].mxu0
    %v377 = vadd.f32 %v203, %v376
    %v378 = vpop.f32.mrb[0].mxu0
    %v379 = vadd.f32 %v207, %v378
    %380 = vmatprep.mubr.bf16.mxu0 0
    %381 = vmatmul.mubr.bf16.gmra.mrb[0].mxu0 %v243
    %v382 = vpop.f32.mrb[0].mxu0
    %v383 = vadd.f32 %v203, %v382
    %v384 = vpop.f32.mrb[0].mxu0
    %v385 = vadd.f32 %v207, %v384
    %v386 = vpop.f32.mrb[0].mxu0
    %v387 = vadd.f32 %v203, %v386
    %v388 = vpop.f32.mrb[0].mxu0
    %v389 = vadd.f32 %v207, %v388
    %390 = vdwg.mxu0
    %391 = vst [vmem:[#allocation2] sm:$0xff] %v280
    %392 = vst [vmem:[#allocation2 + $0x8] sm:$0xff] %v282
    %393 = vst [vmem:[#allocation2 + $0x10] sm:$0xff] %v353
    %394 = vst [vmem:[#allocation2 + $0x18] sm:$0xff] %v355
    %395 = vst [vmem:[#allocation2 + $0x20] sm:$0xff] %v284
    %396 = vst [vmem:[#allocation2 + $0x28] sm:$0xff] %v286
    %397 = vst [vmem:[#allocation2 + $0x30] sm:$0xff] %v357
    %398 = vst [vmem:[#allocation2 + $0x38] sm:$0xff] %v359
    %399 = vst [vmem:[#allocation2 + $0x40] sm:$0xff] %v290
    %400 = vst [vmem:[#allocation2 + $0x48] sm:$0xff] %v292
    %401 = vst [vmem:[#allocation2 + $0x50] sm:$0xff] %v363
    %402 = vst [vmem:[#allocation2 + $0x58] sm:$0xff] %v365
    %403 = vst [vmem:[#allocation2 + $0x60] sm:$0xff] %v294
    %404 = vst [vmem:[#allocation2 + $0x68] sm:$0xff] %v296
    %405 = vst [vmem:[#allocation2 + $0x70] sm:$0xff] %v367
    %406 = vst [vmem:[#allocation2 + $0x78] sm:$0xff] %v369
    %407 = vst [vmem:[#allocation2 + $0x80] sm:$0xff] %v300
    %408 = vst [vmem:[#allocation2 + $0x88] sm:$0xff] %v302
    %409 = vst [vmem:[#allocation2 + $0x90] sm:$0xff] %v373
    %410 = vst [vmem:[#allocation2 + $0x98] sm:$0xff] %v375
    %411 = vst [vmem:[#allocation2 + $0xa0] sm:$0xff] %v304
    %412 = vst [vmem:[#allocation2 + $0xa8] sm:$0xff] %v306
    %413 = vst [vmem:[#allocation2 + $0xb0] sm:$0xff] %v377
    %414 = vst [vmem:[#allocation2 + $0xb8] sm:$0xff] %v379
    %415 = vst [vmem:[#allocation2 + $0xc0] sm:$0xff] %v310
    %416 = vst [vmem:[#allocation2 + $0xc8] sm:$0xff] %v312
    %417 = vst [vmem:[#allocation2 + $0xd0] sm:$0xff] %v383
    %418 = vst [vmem:[#allocation2 + $0xd8] sm:$0xff] %v385
    %419 = vst [vmem:[#allocation2 + $0xe0] sm:$0xff] %v314
    %420 = vst [vmem:[#allocation2 + $0xe8] sm:$0xff] %v316
    %421 = vst [vmem:[#allocation2 + $0xf0] sm:$0xff] %v387
    %422 = vst [vmem:[#allocation2 + $0xf8] sm:$0xff] %v389
    %v423 = vld [vmem:[#allocation8] sm:$0xff]
    %v424 = vld [vmem:[#allocation8 + $0x8] sm:$0xff]
    %v425 = vld [vmem:[#allocation8 + $0x10] sm:$0xff]
    %v426 = vld [vmem:[#allocation8 + $0x18] sm:$0xff]
    %v427 = vld [vmem:[#allocation8 + $0x20] sm:$0xff]
    %v428 = vld [vmem:[#allocation8 + $0x28] sm:$0xff]
    %v429 = vld [vmem:[#allocation8 + $0x30] sm:$0xff]
    %v430 = vld [vmem:[#allocation8 + $0x38] sm:$0xff]
    %v431 = vld [vmem:[#allocation8 + $0x40] sm:$0xff]
    %v432 = vld [vmem:[#allocation8 + $0x48] sm:$0xff]
    %v433 = vld [vmem:[#allocation8 + $0x50] sm:$0xff]
    %v434 = vld [vmem:[#allocation8 + $0x58] sm:$0xff]
    %v435 = vld [vmem:[#allocation8 + $0x60] sm:$0xff]
    %v436 = vld [vmem:[#allocation8 + $0x68] sm:$0xff]
    %v437 = vld [vmem:[#allocation8 + $0x70] sm:$0xff]
    %v438 = vld [vmem:[#allocation8 + $0x78] sm:$0xff]
    %v439 = vld [vmem:[#allocation8 + $0x80] sm:$0xff]
    %v440 = vld [vmem:[#allocation8 + $0x88] sm:$0xff]
    %v441 = vld [vmem:[#allocation8 + $0x90] sm:$0xff]
    %v442 = vld [vmem:[#allocation8 + $0x98] sm:$0xff]
    %v443 = vld [vmem:[#allocation8 + $0xa0] sm:$0xff]
    %v444 = vld [vmem:[#allocation8 + $0xa8] sm:$0xff]
    %v445 = vld [vmem:[#allocation8 + $0xb0] sm:$0xff]
    %v446 = vld [vmem:[#allocation8 + $0xb8] sm:$0xff]
    %v447 = vld [vmem:[#allocation8 + $0xc0] sm:$0xff]
    %v448 = vld [vmem:[#allocation8 + $0xc8] sm:$0xff]
    %v449 = vld [vmem:[#allocation8 + $0xd0] sm:$0xff]
    %v450 = vld [vmem:[#allocation8 + $0xd8] sm:$0xff]
    %v451 = vld [vmem:[#allocation8 + $0xe0] sm:$0xff]
    %v452 = vld [vmem:[#allocation8 + $0xe8] sm:$0xff]
    %v453 = vld [vmem:[#allocation8 + $0xf0] sm:$0xff]
    %v454 = vld [vmem:[#allocation8 + $0xf8] sm:$0xff]
    %v455 = vld [vmem:[#allocation2] sm:$0xff]
    %v456 = vld [vmem:[#allocation2 + $0x8] sm:$0xff]
    %v457 = vld [vmem:[#allocation2 + $0x10] sm:$0xff]
    %v458 = vld [vmem:[#allocation2 + $0x18] sm:$0xff]
    %v491 = vunpack.c.l.b16 %v423
    %v492 = vunpack.c.h.b16 %v423
    %v493 = vunpack.c.l.b16 %v424
    %v494 = vunpack.c.h.b16 %v424
    %v495 = vunpack.c.l.b16 %v425
    %v496 = vunpack.c.h.b16 %v425
    %v497 = vunpack.c.l.b16 %v426
    %v498 = vunpack.c.h.b16 %v426
    %v499 = vunpack.c.l.b16 %v427
    %v500 = vunpack.c.h.b16 %v427
    %v501 = vunpack.c.l.b16 %v428
    %v502 = vunpack.c.h.b16 %v428
    %v503 = vunpack.c.l.b16 %v429
    %v504 = vunpack.c.h.b16 %v429
    %v505 = vunpack.c.l.b16 %v430
    %v506 = vunpack.c.h.b16 %v430
    %v507 = vunpack.c.l.b16 %v431
    %v508 = vunpack.c.h.b16 %v431
    %v509 = vunpack.c.l.b16 %v432
    %v510 = vunpack.c.h.b16 %v432
    %v511 = vunpack.c.l.b16 %v433
    %v512 = vunpack.c.h.b16 %v433
    %v513 = vunpack.c.l.b16 %v434
    %v514 = vunpack.c.h.b16 %v434
    %v515 = vunpack.c.l.b16 %v435
    %v516 = vunpack.c.h.b16 %v435
    %v517 = vunpack.c.l.b16 %v436
    %v518 = vunpack.c.h.b16 %v436
    %v519 = vunpack.c.l.b16 %v437
    %v520 = vunpack.c.h.b16 %v437
    %v521 = vunpack.c.l.b16 %v438
    %v522 = vunpack.c.h.b16 %v438
    %v523 = vunpack.c.l.b16 %v439
    %v524 = vunpack.c.h.b16 %v439
    %v525 = vunpack.c.l.b16 %v440
    %v526 = vunpack.c.h.b16 %v440
    %v527 = vunpack.c.l.b16 %v441
    %v528 = vunpack.c.h.b16 %v441
    %v529 = vunpack.c.l.b16 %v442
    %v530 = vunpack.c.h.b16 %v442
    %v531 = vunpack.c.l.b16 %v443
    %v532 = vunpack.c.h.b16 %v443
    %v533 = vunpack.c.l.b16 %v444
    %v534 = vunpack.c.h.b16 %v444
    %v535 = vunpack.c.l.b16 %v445
    %v536 = vunpack.c.h.b16 %v445
    %v537 = vunpack.c.l.b16 %v446
    %v538 = vunpack.c.h.b16 %v446
    %v539 = vunpack.c.l.b16 %v447
    %v540 = vunpack.c.h.b16 %v447
    %v541 = vunpack.c.l.b16 %v448
    %v542 = vunpack.c.h.b16 %v448
    %v543 = vunpack.c.l.b16 %v449
    %v544 = vunpack.c.h.b16 %v449
    %v545 = vunpack.c.l.b16 %v450
    %v546 = vunpack.c.h.b16 %v450
    %v547 = vunpack.c.l.b16 %v451
    %v548 = vunpack.c.h.b16 %v451
    %v549 = vunpack.c.l.b16 %v452
    %v550 = vunpack.c.h.b16 %v452
    %v551 = vunpack.c.l.b16 %v453
    %v552 = vunpack.c.h.b16 %v453
    %v553 = vunpack.c.l.b16 %v454
    %v554 = vunpack.c.h.b16 %v454
    %v555 = vpack.c.b16 %v495, %v491
    %v556 = vpack.c.b16 %v496, %v492
    %v557 = vpack.c.b16 %v497, %v493
    %v558 = vpack.c.b16 %v498, %v494
    %v559 = vpack.c.b16 %v503, %v499
    %v560 = vpack.c.b16 %v504, %v500
    %v561 = vpack.c.b16 %v505, %v501
    %v562 = vpack.c.b16 %v506, %v502
    %v563 = vpack.c.b16 %v511, %v507
    %v564 = vpack.c.b16 %v512, %v508
    %v565 = vpack.c.b16 %v513, %v509
    %v566 = vpack.c.b16 %v514, %v510
    %v567 = vpack.c.b16 %v519, %v515
    %v568 = vpack.c.b16 %v520, %v516
    %v569 = vpack.c.b16 %v521, %v517
    %v570 = vpack.c.b16 %v522, %v518
    %v571 = vpack.c.b16 %v527, %v523
    %v572 = vpack.c.b16 %v528, %v524
    %v573 = vpack.c.b16 %v529, %v525
    %v574 = vpack.c.b16 %v530, %v526
    %v575 = vpack.c.b16 %v535, %v531
    %v576 = vpack.c.b16 %v536, %v532
    %v577 = vpack.c.b16 %v537, %v533
    %v578 = vpack.c.b16 %v538, %v534
    %v579 = vpack.c.b16 %v543, %v539
    %v580 = vpack.c.b16 %v544, %v540
    %v581 = vpack.c.b16 %v545, %v541
    %v582 = vpack.c.b16 %v546, %v542
    %v583 = vpack.c.b16 %v551, %v547
    %v584 = vpack.c.b16 %v552, %v548
    %v585 = vpack.c.b16 %v553, %v549
    %v586 = vpack.c.b16 %v554, %v550
    %619 = vmatprep.subr.bf16.mxu0 %v556
    %620 = vmatpush1.bf16.msra.mxu0 %v555
    %621 = vmatprep.subr.bf16.mxu0 %v560
    %622 = vmatpush1.bf16.msra.mxu0 %v559
    %623 = vmatprep.subr.bf16.mxu0 %v564
    %624 = vmatpush1.bf16.msra.mxu0 %v563
    %625 = vmatprep.subr.bf16.mxu0 %v568
    %626 = vmatpush1.bf16.msra.mxu0 %v567
    %627 = vmatprep.subr.bf16.mxu0 %v572
    %628 = vmatpush1.bf16.msra.mxu0 %v571
    %629 = vmatprep.subr.bf16.mxu0 %v576
    %630 = vmatpush1.bf16.msra.mxu0 %v575
    %631 = vmatprep.subr.bf16.mxu0 %v580
    %632 = vmatpush1.bf16.msra.mxu0 %v579
    %633 = vmatprep.subr.bf16.mxu0 %v584
    %634 = vmatpush1.bf16.msra.mxu0 %v583
    %635 = vmatprep.subr.bf16.mxu0 0
    %636 = vmatpush1.bf16.msra.mxu0 0
    %637 = vmatprep.subr.bf16.mxu0 0
    %638 = vmatpush1.bf16.msra.mxu0 0
    %639 = vmatprep.subr.bf16.mxu0 0
    %640 = vmatpush1.bf16.msra.mxu0 0
    %641 = vmatprep.subr.bf16.mxu0 0
    %642 = vmatpush1.bf16.msra.mxu0 0
    %643 = vmatprep.subr.bf16.mxu0 0
    %644 = vmatpush1.bf16.msra.mxu0 0
    %645 = vmatprep.subr.bf16.mxu0 0
    %646 = vmatpush1.bf16.msra.mxu0 0
    %647 = vmatprep.subr.bf16.mxu0 0
    %648 = vmatpush1.bf16.msra.mxu0 0
    %649 = vmatprep.subr.bf16.mxu0 0
    %650 = vmatpush1.bf16.msra.mxu0 0
    %651 = vmatprep.mubr.bf16.mxu0 0
    %652 = vmatmul.mubr.bf16.gmra.mrb[0].mxu0 0
    %v653 = vpop.f32.mrb[0].mxu0
    %v654 = vadd.f32 0.0, %v653
    %v655 = vpop.f32.mrb[0].mxu0
    %v656 = vadd.f32 0.0, %v655
    %v657 = vpop.f32.mrb[0].mxu0
    %v658 = vpop.f32.mrb[0].mxu0
    %659 = vdwg.mxu0
    %660 = vmatprep.subr.bf16.mxu0 %v558
    %661 = vmatpush1.bf16.msra.mxu0 %v557
    %662 = vmatprep.subr.bf16.mxu0 %v562
    %663 = vmatpush1.bf16.msra.mxu0 %v561
    %664 = vmatprep.subr.bf16.mxu0 %v566
    %665 = vmatpush1.bf16.msra.mxu0 %v565
    %666 = vmatprep.subr.bf16.mxu0 %v570
    %667 = vmatpush1.bf16.msra.mxu0 %v569
    %668 = vmatprep.subr.bf16.mxu0 %v574
    %669 = vmatpush1.bf16.msra.mxu0 %v573
    %670 = vmatprep.subr.bf16.mxu0 %v578
    %671 = vmatpush1.bf16.msra.mxu0 %v577
    %672 = vmatprep.subr.bf16.mxu0 %v582
    %673 = vmatpush1.bf16.msra.mxu0 %v581
    %674 = vmatprep.subr.bf16.mxu0 %v586
    %675 = vmatpush1.bf16.msra.mxu0 %v585
    %676 = vmatprep.subr.bf16.mxu0 0
    %677 = vmatpush1.bf16.msra.mxu0 0
    %678 = vmatprep.subr.bf16.mxu0 0
    %679 = vmatpush1.bf16.msra.mxu0 0
    %680 = vmatprep.subr.bf16.mxu0 0
    %681 = vmatpush1.bf16.msra.mxu0 0
    %682 = vmatprep.subr.bf16.mxu0 0
    %683 = vmatpush1.bf16.msra.mxu0 0
    %684 = vmatprep.subr.bf16.mxu0 0
    %685 = vmatpush1.bf16.msra.mxu0 0
    %686 = vmatprep.subr.bf16.mxu0 0
    %687 = vmatpush1.bf16.msra.mxu0 0
    %688 = vmatprep.subr.bf16.mxu0 0
    %689 = vmatpush1.bf16.msra.mxu0 0
    %690 = vmatprep.subr.bf16.mxu0 0
    %691 = vmatpush1.bf16.msra.mxu0 0
    %692 = vmatprep.mubr.bf16.mxu0 0
    %693 = vmatmul.mubr.bf16.gmra.mrb[0].mxu0 0
    %v694 = vpop.f32.mrb[0].mxu0
    %v695 = vadd.f32 0.0, %v694
    %v696 = vpop.f32.mrb[0].mxu0
    %v697 = vadd.f32 0.0, %v696
    %v698 = vpop.f32.mrb[0].mxu0
    %v699 = vpop.f32.mrb[0].mxu0
    %700 = vdwg.mxu0
    %v701 = vadd.f32 %v455, %v654
    %v702 = vadd.f32 %v456, %v656
    %v703 = vadd.f32 %v457, %v695
    %v704 = vadd.f32 %v458, %v697
    %v705 = vxor.u32 %v701, 2147483648
    %v706 = vxor.u32 %v702, 2147483648
    %v707 = vxor.u32 %v703, 2147483648
    %v708 = vmul.f32 %v705, 1.442695
    %v709 = vpow.pop %v708
    %v710 = vmul.f32 %v706, 1.442695
    %v711 = vpow.pop %v710
    %v712 = vmul.f32 %v707, 1.442695
    %v713 = vpow.pop %v712
    %v714 = vadd.f32 %v709, 1.0
    %v715 = vadd.f32 %v711, 1.0
    %v716 = vadd.f32 %v713, 1.0
    %v717 = vrcp.pop %v714
    %v718 = vmul.f32 1.0, %v717
    %v719 = vrcp.pop %v715
    %v720 = vmul.f32 1.0, %v719
    %v721 = vrcp.pop %v716
    %v722 = vmul.f32 1.0, %v721
    %v723 = vtanh.pop %v704
    %v724 = vmul.f32 %v720, 0.0
    %v725 = vmul.f32 %v718, %v723
    %v726 = vadd.f32 %v724, %v725
    %v727 = vtanh.pop %v726
    %v728 = vmul.f32 %v722, %v727
    %v729 = vld [vmem:[#allocation2 + $0x20] sm:$0xff]
    %v730 = vld [vmem:[#allocation2 + $0x28] sm:$0xff]
    %v731 = vld [vmem:[#allocation2 + $0x30] sm:$0xff]
    %v732 = vld [vmem:[#allocation2 + $0x38] sm:$0xff]
    %v733 = vpack.c.bf16 %v728, %v728
    %734 = vmatprep.subr.bf16.mxu0 %v556
    %735 = vmatpush1.bf16.msra.mxu0 %v555
    %736 = vmatprep.subr.bf16.mxu0 %v560
    %737 = vmatpush1.bf16.msra.mxu0 %v559
    %738 = vmatprep.subr.bf16.mxu0 %v564
    %739 = vmatpush1.bf16.msra.mxu0 %v563
    %740 = vmatprep.subr.bf16.mxu0 %v568
    %741 = vmatpush1.bf16.msra.mxu0 %v567
    %742 = vmatprep.subr.bf16.mxu0 %v572
    %743 = vmatpush1.bf16.msra.mxu0 %v571
    %744 = vmatprep.subr.bf16.mxu0 %v576
    %745 = vmatpush1.bf16.msra.mxu0 %v575
    %746 = vmatprep.subr.bf16.mxu0 %v580
    %747 = vmatpush1.bf16.msra.mxu0 %v579
    %748 = vmatprep.subr.bf16.mxu0 %v584
    %749 = vmatpush1.bf16.msra.mxu0 %v583
    %750 = vmatprep.subr.bf16.mxu0 0
    %751 = vmatpush1.bf16.msra.mxu0 0
    %752 = vmatprep.subr.bf16.mxu0 0
    %753 = vmatpush1.bf16.msra.mxu0 0
    %754 = vmatprep.subr.bf16.mxu0 0
    %755 = vmatpush1.bf16.msra.mxu0 0
    %756 = vmatprep.subr.bf16.mxu0 0
    %757 = vmatpush1.bf16.msra.mxu0 0
    %758 = vmatprep.subr.bf16.mxu0 0
    %759 = vmatpush1.bf16.msra.mxu0 0
    %760 = vmatprep.subr.bf16.mxu0 0
    %761 = vmatpush1.bf16.msra.mxu0 0
    %762 = vmatprep.subr.bf16.mxu0 0
    %763 = vmatpush1.bf16.msra.mxu0 0
    %764 = vmatprep.subr.bf16.mxu0 0
    %765 = vmatpush1.bf16.msra.mxu0 0
    %766 = vmatprep.mubr.bf16.mxu0 0
    %767 = vmatmul.mubr.bf16.gmra.mrb[0].mxu0 %v733
    %v768 = vpop.f32.mrb[0].mxu0
    %v769 = vadd.f32 0.0, %v768
    %v770 = vpop.f32.mrb[0].mxu0
    %v771 = vadd.f32 0.0, %v770
    %v772 = vpop.f32.mrb[0].mxu0
    %v773 = vpop.f32.mrb[0].mxu0
    %774 = vdwg.mxu0
    %775 = vmatprep.subr.bf16.mxu0 %v558
    %776 = vmatpush1.bf16.msra.mxu0 %v557
    %777 = vmatprep.subr.bf16.mxu0 %v562
    %778 = vmatpush1.bf16.msra.mxu0 %v561
    %779 = vmatprep.subr.bf16.mxu0 %v566
    %780 = vmatpush1.bf16.msra.mxu0 %v565
    %781 = vmatprep.subr.bf16.mxu0 %v570
    %782 = vmatpush1.bf16.msra.mxu0 %v569
    %783 = vmatprep.subr.bf16.mxu0 %v574
    %784 = vmatpush1.bf16.msra.mxu0 %v573
    %785 = vmatprep.subr.bf16.mxu0 %v578
    %786 = vmatpush1.bf16.msra.mxu0 %v577
    %787 = vmatprep.subr.bf16.mxu0 %v582
    %788 = vmatpush1.bf16.msra.mxu0 %v581
    %789 = vmatprep.subr.bf16.mxu0 %v586
    %790 = vmatpush1.bf16.msra.mxu0 %v585
    %791 = vmatprep.subr.bf16.mxu0 0
    %792 = vmatpush1.bf16.msra.mxu0 0
    %793 = vmatprep.subr.bf16.mxu0 0
    %794 = vmatpush1.bf16.msra.mxu0 0
    %795 = vmatprep.subr.bf16.mxu0 0
    %796 = vmatpush1.bf16.msra.mxu0 0
    %797 = vmatprep.subr.bf16.mxu0 0
    %798 = vmatpush1.bf16.msra.mxu0 0
    %799 = vmatprep.subr.bf16.mxu0 0
    %800 = vmatpush1.bf16.msra.mxu0 0
    %801 = vmatprep.subr.bf16.mxu0 0
    %802 = vmatpush1.bf16.msra.mxu0 0
    %803 = vmatprep.subr.bf16.mxu0 0
    %804 = vmatpush1.bf16.msra.mxu0 0
    %805 = vmatprep.subr.bf16.mxu0 0
    %806 = vmatpush1.bf16.msra.mxu0 0
    %807 = vmatprep.mubr.bf16.mxu0 0
    %808 = vmatmul.mubr.bf16.gmra.mrb[0].mxu0 %v733
    %v809 = vpop.f32.mrb[0].mxu0
    %v810 = vadd.f32 0.0, %v809
    %v811 = vpop.f32.mrb[0].mxu0
    %v812 = vadd.f32 0.0, %v811
    %v813 = vpop.f32.mrb[0].mxu0
    %v814 = vpop.f32.mrb[0].mxu0
    %815 = vdwg.mxu0
    %v816 = vadd.f32 %v729, %v769
    %v817 = vadd.f32 %v730, %v771
    %v818 = vadd.f32 %v731, %v810
    %v819 = vadd.f32 %v732, %v812
    %v820 = vxor.u32 %v816, 2147483648
    %v821 = vxor.u32 %v817, 2147483648
    %v822 = vxor.u32 %v818, 2147483648
    %v823 = vmul.f32 %v820, 1.442695
    %v824 = vpow.pop %v823
    %v825 = vmul.f32 %v821, 1.442695
    %v826 = vpow.pop %v825
    %v827 = vmul.f32 %v822, 1.442695
    %v828 = vpow.pop %v827
    %v829 = vadd.f32 %v824, 1.0
    %v830 = vadd.f32 %v826, 1.0
    %v831 = vadd.f32 %v828, 1.0
    %v832 = vrcp.pop %v829
    %v833 = vmul.f32 1.0, %v832
    %v834 = vrcp.pop %v830
    %v835 = vmul.f32 1.0, %v834
    %v836 = vrcp.pop %v831
    %v837 = vmul.f32 1.0, %v836
    %v838 = vtanh.pop %v819
    %v839 = vmul.f32 %v835, %v726
    %v840 = vmul.f32 %v833, %v838
    %v841 = vadd.f32 %v839, %v840
    %v842 = vtanh.pop %v841
    %v843 = vmul.f32 %v837, %v842
    %v844 = vld [vmem:[#allocation2 + $0x40] sm:$0xff]
    %v845 = vld [vmem:[#allocation2 + $0x48] sm:$0xff]
    %v846 = vld [vmem:[#allocation2 + $0x50] sm:$0xff]
    %v847 = vld [vmem:[#allocation2 + $0x58] sm:$0xff]
    %v848 = vpack.c.bf16 %v843, %v843
    %849 = vmatprep.subr.bf16.mxu0 %v556
    %850 = vmatpush1.bf16.msra.mxu0 %v555
    %851 = vmatprep.subr.bf16.mxu0 %v560
    %852 = vmatpush1.bf16.msra.mxu0 %v559
    %853 = vmatprep.subr.bf16.mxu0 %v564
    %854 = vmatpush1.bf16.msra.mxu0 %v563
    %855 = vmatprep.subr.bf16.mxu0 %v568
    %856 = vmatpush1.bf16.msra.mxu0 %v567
    %857 = vmatprep.subr.bf16.mxu0 %v572
    %858 = vmatpush1.bf16.msra.mxu0 %v571
    %859 = vmatprep.subr.bf16.mxu0 %v576
    %860 = vmatpush1.bf16.msra.mxu0 %v575
    %861 = vmatprep.subr.bf16.mxu0 %v580
    %862 = vmatpush1.bf16.msra.mxu0 %v579
    %863 = vmatprep.subr.bf16.mxu0 %v584
    %864 = vmatpush1.bf16.msra.mxu0 %v583
    %865 = vmatprep.subr.bf16.mxu0 0
    %866 = vmatpush1.bf16.msra.mxu0 0
    %867 = vmatprep.subr.bf16.mxu0 0
    %868 = vmatpush1.bf16.msra.mxu0 0
    %869 = vmatprep.subr.bf16.mxu0 0
    %870 = vmatpush1.bf16.msra.mxu0 0
    %871 = vmatprep.subr.bf16.mxu0 0
    %872 = vmatpush1.bf16.msra.mxu0 0
    %873 = vmatprep.subr.bf16.mxu0 0
    %874 = vmatpush1.bf16.msra.mxu0 0
    %875 = vmatprep.subr.bf16.mxu0 0
    %876 = vmatpush1.bf16.msra.mxu0 0
    %877 = vmatprep.subr.bf16.mxu0 0
    %878 = vmatpush1.bf16.msra.mxu0 0
    %879 = vmatprep.subr.bf16.mxu0 0
    %880 = vmatpush1.bf16.msra.mxu0 0
    %881 = vmatprep.mubr.bf16.mxu0 0
    %882 = vmatmul.mubr.bf16.gmra.mrb[0].mxu0 %v848
    %v883 = vpop.f32.mrb[0].mxu0
    %v884 = vadd.f32 0.0, %v883
    %v885 = vpop.f32.mrb[0].mxu0
    %v886 = vadd.f32 0.0, %v885
    %v887 = vpop.f32.mrb[0].mxu0
    %v888 = vpop.f32.mrb[0].mxu0
    %889 = vdwg.mxu0
    %890 = vmatprep.subr.bf16.mxu0 %v558
    %891 = vmatpush1.bf16.msra.mxu0 %v557
    %892 = vmatprep.subr.bf16.mxu0 %v562
    %893 = vmatpush1.bf16.msra.mxu0 %v561
    %894 = vmatprep.subr.bf16.mxu0 %v566
    %895 = vmatpush1.bf16.msra.mxu0 %v565
    %896 = vmatprep.subr.bf16.mxu0 %v570
    %897 = vmatpush1.bf16.msra.mxu0 %v569
    %898 = vmatprep.subr.bf16.mxu0 %v574
    %899 = vmatpush1.bf16.msra.mxu0 %v573
    %900 = vmatprep.subr.bf16.mxu0 %v578
    %901 = vmatpush1.bf16.msra.mxu0 %v577
    %902 = vmatprep.subr.bf16.mxu0 %v582
    %903 = vmatpush1.bf16.msra.mxu0 %v581
    %904 = vmatprep.subr.bf16.mxu0 %v586
    %905 = vmatpush1.bf16.msra.mxu0 %v585
    %906 = vmatprep.subr.bf16.mxu0 0
    %907 = vmatpush1.bf16.msra.mxu0 0
    %908 = vmatprep.subr.bf16.mxu0 0
    %909 = vmatpush1.bf16.msra.mxu0 0
    %910 = vmatprep.subr.bf16.mxu0 0
    %911 = vmatpush1.bf16.msra.mxu0 0
    %912 = vmatprep.subr.bf16.mxu0 0
    %913 = vmatpush1.bf16.msra.mxu0 0
    %914 = vmatprep.subr.bf16.mxu0 0
    %915 = vmatpush1.bf16.msra.mxu0 0
    %916 = vmatprep.subr.bf16.mxu0 0
    %917 = vmatpush1.bf16.msra.mxu0 0
    %918 = vmatprep.subr.bf16.mxu0 0
    %919 = vmatpush1.bf16.msra.mxu0 0
    %920 = vmatprep.subr.bf16.mxu0 0
    %921 = vmatpush1.bf16.msra.mxu0 0
    %922 = vmatprep.mubr.bf16.mxu0 0
    %923 = vmatmul.mubr.bf16.gmra.mrb[0].mxu0 %v848
    %v924 = vpop.f32.mrb[0].mxu0
    %v925 = vadd.f32 0.0, %v924
    %v926 = vpop.f32.mrb[0].mxu0
    %v927 = vadd.f32 0.0, %v926
    %v928 = vpop.f32.mrb[0].mxu0
    %v929 = vpop.f32.mrb[0].mxu0
    %930 = vdwg.mxu0
    %v931 = vadd.f32 %v844, %v884
    %v932 = vadd.f32 %v845, %v886
    %v933 = vadd.f32 %v846, %v925
    %v934 = vadd.f32 %v847, %v927
    %v935 = vxor.u32 %v931, 2147483648
    %v936 = vxor.u32 %v932, 2147483648
    %v937 = vxor.u32 %v933, 2147483648
    %v938 = vmul.f32 %v935, 1.442695
    %v939 = vpow.pop %v938
    %v940 = vmul.f32 %v936, 1.442695
    %v941 = vpow.pop %v940
    %v942 = vmul.f32 %v937, 1.442695
    %v943 = vpow.pop %v942
    %v944 = vadd.f32 %v939, 1.0
    %v945 = vadd.f32 %v941, 1.0
    %v946 = vadd.f32 %v943, 1.0
    %v947 = vrcp.pop %v944
    %v948 = vmul.f32 1.0, %v947
    %v949 = vrcp.pop %v945
    %v950 = vmul.f32 1.0, %v949
    %v951 = vrcp.pop %v946
    %v952 = vmul.f32 1.0, %v951
    %v953 = vtanh.pop %v934
    %v954 = vmul.f32 %v950, %v841
    %v955 = vmul.f32 %v948, %v953
    %v956 = vadd.f32 %v954, %v955
    %v957 = vtanh.pop %v956
    %v958 = vmul.f32 %v952, %v957
    %v959 = vld [vmem:[#allocation2 + $0x60] sm:$0xff]
    %v960 = vld [vmem:[#allocation2 + $0x68] sm:$0xff]
    %v961 = vld [vmem:[#allocation2 + $0x70] sm:$0xff]
    %v962 = vld [vmem:[#allocation2 + $0x78] sm:$0xff]
    %v963 = vpack.c.bf16 %v958, %v958
    %964 = vmatprep.subr.bf16.mxu0 %v556
    %965 = vmatpush1.bf16.msra.mxu0 %v555
    %966 = vmatprep.subr.bf16.mxu0 %v560
    %967 = vmatpush1.bf16.msra.mxu0 %v559
    %968 = vmatprep.subr.bf16.mxu0 %v564
    %969 = vmatpush1.bf16.msra.mxu0 %v563
    %970 = vmatprep.subr.bf16.mxu0 %v568
    %971 = vmatpush1.bf16.msra.mxu0 %v567
    %972 = vmatprep.subr.bf16.mxu0 %v572
    %973 = vmatpush1.bf16.msra.mxu0 %v571
    %974 = vmatprep.subr.bf16.mxu0 %v576
    %975 = vmatpush1.bf16.msra.mxu0 %v575
    %976 = vmatprep.subr.bf16.mxu0 %v580
    %977 = vmatpush1.bf16.msra.mxu0 %v579
    %978 = vmatprep.subr.bf16.mxu0 %v584
    %979 = vmatpush1.bf16.msra.mxu0 %v583
    %980 = vmatprep.subr.bf16.mxu0 0
    %981 = vmatpush1.bf16.msra.mxu0 0
    %982 = vmatprep.subr.bf16.mxu0 0
    %983 = vmatpush1.bf16.msra.mxu0 0
    %984 = vmatprep.subr.bf16.mxu0 0
    %985 = vmatpush1.bf16.msra.mxu0 0
    %986 = vmatprep.subr.bf16.mxu0 0
    %987 = vmatpush1.bf16.msra.mxu0 0
    %988 = vmatprep.subr.bf16.mxu0 0
    %989 = vmatpush1.bf16.msra.mxu0 0
    %990 = vmatprep.subr.bf16.mxu0 0
    %991 = vmatpush1.bf16.msra.mxu0 0
    %992 = vmatprep.subr.bf16.mxu0 0
    %993 = vmatpush1.bf16.msra.mxu0 0
    %994 = vmatprep.subr.bf16.mxu0 0
    %995 = vmatpush1.bf16.msra.mxu0 0
    %996 = vmatprep.mubr.bf16.mxu0 0
    %997 = vmatmul.mubr.bf16.gmra.mrb[0].mxu0 %v963
    %v998 = vpop.f32.mrb[0].mxu0
    %v999 = vadd.f32 0.0, %v998
    %v1000 = vpop.f32.mrb[0].mxu0
    %v1001 = vadd.f32 0.0, %v1000
    %v1002 = vpop.f32.mrb[0].mxu0
    %v1003 = vpop.f32.mrb[0].mxu0
    %1004 = vdwg.mxu0
    %1005 = vmatprep.subr.bf16.mxu0 %v558
    %1006 = vmatpush1.bf16.msra.mxu0 %v557
    %1007 = vmatprep.subr.bf16.mxu0 %v562
    %1008 = vmatpush1.bf16.msra.mxu0 %v561
    %1009 = vmatprep.subr.bf16.mxu0 %v566
    %1010 = vmatpush1.bf16.msra.mxu0 %v565
    %1011 = vmatprep.subr.bf16.mxu0 %v570
    %1012 = vmatpush1.bf16.msra.mxu0 %v569
    %1013 = vmatprep.subr.bf16.mxu0 %v574
    %1014 = vmatpush1.bf16.msra.mxu0 %v573
    %1015 = vmatprep.subr.bf16.mxu0 %v578
    %1016 = vmatpush1.bf16.msra.mxu0 %v577
    %1017 = vmatprep.subr.bf16.mxu0 %v582
    %1018 = vmatpush1.bf16.msra.mxu0 %v581
    %1019 = vmatprep.subr.bf16.mxu0 %v586
    %1020 = vmatpush1.bf16.msra.mxu0 %v585
    %1021 = vmatprep.subr.bf16.mxu0 0
    %1022 = vmatpush1.bf16.msra.mxu0 0
    %1023 = vmatprep.subr.bf16.mxu0 0
    %1024 = vmatpush1.bf16.msra.mxu0 0
    %1025 = vmatprep.subr.bf16.mxu0 0
    %1026 = vmatpush1.bf16.msra.mxu0 0
    %1027 = vmatprep.subr.bf16.mxu0 0
    %1028 = vmatpush1.bf16.msra.mxu0 0
    %1029 = vmatprep.subr.bf16.mxu0 0
    %1030 = vmatpush1.bf16.msra.mxu0 0
    %1031 = vmatprep.subr.bf16.mxu0 0
    %1032 = vmatpush1.bf16.msra.mxu0 0
    %1033 = vmatprep.subr.bf16.mxu0 0
    %1034 = vmatpush1.bf16.msra.mxu0 0
    %1035 = vmatprep.subr.bf16.mxu0 0
    %1036 = vmatpush1.bf16.msra.mxu0 0
    %1037 = vmatprep.mubr.bf16.mxu0 0
    %1038 = vmatmul.mubr.bf16.gmra.mrb[0].mxu0 %v963
    %v1039 = vpop.f32.mrb[0].mxu0
    %v1040 = vadd.f32 0.0, %v1039
    %v1041 = vpop.f32.mrb[0].mxu0
    %v1042 = vadd.f32 0.0, %v1041
    %v1043 = vpop.f32.mrb[0].mxu0
    %v1044 = vpop.f32.mrb[0].mxu0
    %1045 = vdwg.mxu0
    %v1046 = vadd.f32 %v959, %v999
    %v1047 = vadd.f32 %v960, %v1001
    %v1048 = vadd.f32 %v961, %v1040
    %v1049 = vadd.f32 %v962, %v1042
    %v1050 = vxor.u32 %v1046, 2147483648
    %v1051 = vxor.u32 %v1047, 2147483648
    %v1052 = vxor.u32 %v1048, 2147483648
    %v1053 = vmul.f32 %v1050, 1.442695
    %v1054 = vpow.pop %v1053
    %v1055 = vmul.f32 %v1051, 1.442695
    %v1056 = vpow.pop %v1055
    %v1057 = vmul.f32 %v1052, 1.442695
    %v1058 = vpow.pop %v1057
    %v1059 = vadd.f32 %v1054, 1.0
    %v1060 = vadd.f32 %v1056, 1.0
    %v1061 = vadd.f32 %v1058, 1.0
    %v1062 = vrcp.pop %v1059
    %v1063 = vmul.f32 1.0, %v1062
    %v1064 = vrcp.pop %v1060
    %v1065 = vmul.f32 1.0, %v1064
    %v1066 = vrcp.pop %v1061
    %v1067 = vmul.f32 1.0, %v1066
    %v1068 = vtanh.pop %v1049
    %v1069 = vmul.f32 %v1065, %v956
    %v1070 = vmul.f32 %v1063, %v1068
    %v1071 = vadd.f32 %v1069, %v1070
    %v1072 = vtanh.pop %v1071
    %v1073 = vmul.f32 %v1067, %v1072
    %v1074 = vld [vmem:[#allocation2 + $0x80] sm:$0xff]
    %v1075 = vld [vmem:[#allocation2 + $0x88] sm:$0xff]
    %v1076 = vld [vmem:[#allocation2 + $0x90] sm:$0xff]
    %v1077 = vld [vmem:[#allocation2 + $0x98] sm:$0xff]
    %v1078 = vpack.c.bf16 %v1073, %v1073
    %1079 = vmatprep.subr.bf16.mxu0 %v556
    %1080 = vmatpush1.bf16.msra.mxu0 %v555
    %1081 = vmatprep.subr.bf16.mxu0 %v560
    %1082 = vmatpush1.bf16.msra.mxu0 %v559
    %1083 = vmatprep.subr.bf16.mxu0 %v564
    %1084 = vmatpush1.bf16.msra.mxu0 %v563
    %1085 = vmatprep.subr.bf16.mxu0 %v568
    %1086 = vmatpush1.bf16.msra.mxu0 %v567
    %1087 = vmatprep.subr.bf16.mxu0 %v572
    %1088 = vmatpush1.bf16.msra.mxu0 %v571
    %1089 = vmatprep.subr.bf16.mxu0 %v576
    %1090 = vmatpush1.bf16.msra.mxu0 %v575
    %1091 = vmatprep.subr.bf16.mxu0 %v580
    %1092 = vmatpush1.bf16.msra.mxu0 %v579
    %1093 = vmatprep.subr.bf16.mxu0 %v584
    %1094 = vmatpush1.bf16.msra.mxu0 %v583
    %1095 = vmatprep.subr.bf16.mxu0 0
    %1096 = vmatpush1.bf16.msra.mxu0 0
    %1097 = vmatprep.subr.bf16.mxu0 0
    %1098 = vmatpush1.bf16.msra.mxu0 0
    %1099 = vmatprep.subr.bf16.mxu0 0
    %1100 = vmatpush1.bf16.msra.mxu0 0
    %1101 = vmatprep.subr.bf16.mxu0 0
    %1102 = vmatpush1.bf16.msra.mxu0 0
    %1103 = vmatprep.subr.bf16.mxu0 0
    %1104 = vmatpush1.bf16.msra.mxu0 0
    %1105 = vmatprep.subr.bf16.mxu0 0
    %1106 = vmatpush1.bf16.msra.mxu0 0
    %1107 = vmatprep.subr.bf16.mxu0 0
    %1108 = vmatpush1.bf16.msra.mxu0 0
    %1109 = vmatprep.subr.bf16.mxu0 0
    %1110 = vmatpush1.bf16.msra.mxu0 0
    %1111 = vmatprep.mubr.bf16.mxu0 0
    %1112 = vmatmul.mubr.bf16.gmra.mrb[0].mxu0 %v1078
    %v1113 = vpop.f32.mrb[0].mxu0
    %v1114 = vadd.f32 0.0, %v1113
    %v1115 = vpop.f32.mrb[0].mxu0
    %v1116 = vadd.f32 0.0, %v1115
    %v1117 = vpop.f32.mrb[0].mxu0
    %v1118 = vpop.f32.mrb[0].mxu0
    %1119 = vdwg.mxu0
    %1120 = vmatprep.subr.bf16.mxu0 %v558
    %1121 = vmatpush1.bf16.msra.mxu0 %v557
    %1122 = vmatprep.subr.bf16.mxu0 %v562
    %1123 = vmatpush1.bf16.msra.mxu0 %v561
    %1124 = vmatprep.subr.bf16.mxu0 %v566
    %1125 = vmatpush1.bf16.msra.mxu0 %v565
    %1126 = vmatprep.subr.bf16.mxu0 %v570
    %1127 = vmatpush1.bf16.msra.mxu0 %v569
    %1128 = vmatprep.subr.bf16.mxu0 %v574
    %1129 = vmatpush1.bf16.msra.mxu0 %v573
    %1130 = vmatprep.subr.bf16.mxu0 %v578
    %1131 = vmatpush1.bf16.msra.mxu0 %v577
    %1132 = vmatprep.subr.bf16.mxu0 %v582
    %1133 = vmatpush1.bf16.msra.mxu0 %v581
    %1134 = vmatprep.subr.bf16.mxu0 %v586
    %1135 = vmatpush1.bf16.msra.mxu0 %v585
    %1136 = vmatprep.subr.bf16.mxu0 0
    %1137 = vmatpush1.bf16.msra.mxu0 0
    %1138 = vmatprep.subr.bf16.mxu0 0
    %1139 = vmatpush1.bf16.msra.mxu0 0
    %1140 = vmatprep.subr.bf16.mxu0 0
    %1141 = vmatpush1.bf16.msra.mxu0 0
    %1142 = vmatprep.subr.bf16.mxu0 0
    %1143 = vmatpush1.bf16.msra.mxu0 0
    %1144 = vmatprep.subr.bf16.mxu0 0
    %1145 = vmatpush1.bf16.msra.mxu0 0
    %1146 = vmatprep.subr.bf16.mxu0 0
    %1147 = vmatpush1.bf16.msra.mxu0 0
    %1148 = vmatprep.subr.bf16.mxu0 0
    %1149 = vmatpush1.bf16.msra.mxu0 0
    %1150 = vmatprep.subr.bf16.mxu0 0
    %1151 = vmatpush1.bf16.msra.mxu0 0
    %1152 = vmatprep.mubr.bf16.mxu0 0
    %1153 = vmatmul.mubr.bf16.gmra.mrb[0].mxu0 %v1078
    %v1154 = vpop.f32.mrb[0].mxu0
    %v1155 = vadd.f32 0.0, %v1154
    %v1156 = vpop.f32.mrb[0].mxu0
    %v1157 = vadd.f32 0.0, %v1156
    %v1158 = vpop.f32.mrb[0].mxu0
    %v1159 = vpop.f32.mrb[0].mxu0
    %1160 = vdwg.mxu0
    %v1161 = vadd.f32 %v1074, %v1114
    %v1162 = vadd.f32 %v1075, %v1116
    %v1163 = vadd.f32 %v1076, %v1155
    %v1164 = vadd.f32 %v1077, %v1157
    %v1165 = vxor.u32 %v1161, 2147483648
    %v1166 = vxor.u32 %v1162, 2147483648
    %v1167 = vxor.u32 %v1163, 2147483648
    %v1168 = vmul.f32 %v1165, 1.442695
    %v1169 = vpow.pop %v1168
    %v1170 = vmul.f32 %v1166, 1.442695
    %v1171 = vpow.pop %v1170
    %v1172 = vmul.f32 %v1167, 1.442695
    %v1173 = vpow.pop %v1172
    %v1174 = vadd.f32 %v1169, 1.0
    %v1175 = vadd.f32 %v1171, 1.0
    %v1176 = vadd.f32 %v1173, 1.0
    %v1177 = vrcp.pop %v1174
    %v1178 = vmul.f32 1.0, %v1177
    %v1179 = vrcp.pop %v1175
    %v1180 = vmul.f32 1.0, %v1179
    %v1181 = vrcp.pop %v1176
    %v1182 = vmul.f32 1.0, %v1181
    %v1183 = vtanh.pop %v1164
    %v1184 = vmul.f32 %v1180, %v1071
    %v1185 = vmul.f32 %v1178, %v1183
    %v1186 = vadd.f32 %v1184, %v1185
    %v1187 = vtanh.pop %v1186
    %v1188 = vmul.f32 %v1182, %v1187
    %v1189 = vld [vmem:[#allocation2 + $0xa0] sm:$0xff]
    %v1190 = vld [vmem:[#allocation2 + $0xa8] sm:$0xff]
    %v1191 = vld [vmem:[#allocation2 + $0xb0] sm:$0xff]
    %v1192 = vld [vmem:[#allocation2 + $0xb8] sm:$0xff]
    %v1193 = vpack.c.bf16 %v1188, %v1188
    %1194 = vmatprep.subr.bf16.mxu0 %v556
    %1195 = vmatpush1.bf16.msra.mxu0 %v555
    %1196 = vmatprep.subr.bf16.mxu0 %v560
    %1197 = vmatpush1.bf16.msra.mxu0 %v559
    %1198 = vmatprep.subr.bf16.mxu0 %v564
    %1199 = vmatpush1.bf16.msra.mxu0 %v563
    %1200 = vmatprep.subr.bf16.mxu0 %v568
    %1201 = vmatpush1.bf16.msra.mxu0 %v567
    %1202 = vmatprep.subr.bf16.mxu0 %v572
    %1203 = vmatpush1.bf16.msra.mxu0 %v571
    %1204 = vmatprep.subr.bf16.mxu0 %v576
    %1205 = vmatpush1.bf16.msra.mxu0 %v575
    %1206 = vmatprep.subr.bf16.mxu0 %v580
    %1207 = vmatpush1.bf16.msra.mxu0 %v579
    %1208 = vmatprep.subr.bf16.mxu0 %v584
    %1209 = vmatpush1.bf16.msra.mxu0 %v583
    %1210 = vmatprep.subr.bf16.mxu0 0
    %1211 = vmatpush1.bf16.msra.mxu0 0
    %1212 = vmatprep.subr.bf16.mxu0 0
    %1213 = vmatpush1.bf16.msra.mxu0 0
    %1214 = vmatprep.subr.bf16.mxu0 0
    %1215 = vmatpush1.bf16.msra.mxu0 0
    %1216 = vmatprep.subr.bf16.mxu0 0
    %1217 = vmatpush1.bf16.msra.mxu0 0
    %1218 = vmatprep.subr.bf16.mxu0 0
    %1219 = vmatpush1.bf16.msra.mxu0 0
    %1220 = vmatprep.subr.bf16.mxu0 0
    %1221 = vmatpush1.bf16.msra.mxu0 0
    %1222 = vmatprep.subr.bf16.mxu0 0
    %1223 = vmatpush1.bf16.msra.mxu0 0
    %1224 = vmatprep.subr.bf16.mxu0 0
    %1225 = vmatpush1.bf16.msra.mxu0 0
    %1226 = vmatprep.mubr.bf16.mxu0 0
    %1227 = vmatmul.mubr.bf16.gmra.mrb[0].mxu0 %v1193
    %v1228 = vpop.f32.mrb[0].mxu0
    %v1229 = vadd.f32 0.0, %v1228
    %v1230 = vpop.f32.mrb[0].mxu0
    %v1231 = vadd.f32 0.0, %v1230
    %v1232 = vpop.f32.mrb[0].mxu0
    %v1233 = vpop.f32.mrb[0].mxu0
    %1234 = vdwg.mxu0
    %1235 = vmatprep.subr.bf16.mxu0 %v558
    %1236 = vmatpush1.bf16.msra.mxu0 %v557
    %1237 = vmatprep.subr.bf16.mxu0 %v562
    %1238 = vmatpush1.bf16.msra.mxu0 %v561
    %1239 = vmatprep.subr.bf16.mxu0 %v566
    %1240 = vmatpush1.bf16.msra.mxu0 %v565
    %1241 = vmatprep.subr.bf16.mxu0 %v570
    %1242 = vmatpush1.bf16.msra.mxu0 %v569
    %1243 = vmatprep.subr.bf16.mxu0 %v574
    %1244 = vmatpush1.bf16.msra.mxu0 %v573
    %1245 = vmatprep.subr.bf16.mxu0 %v578
    %1246 = vmatpush1.bf16.msra.mxu0 %v577
    %1247 = vmatprep.subr.bf16.mxu0 %v582
    %1248 = vmatpush1.bf16.msra.mxu0 %v581
    %1249 = vmatprep.subr.bf16.mxu0 %v586
    %1250 = vmatpush1.bf16.msra.mxu0 %v585
    %1251 = vmatprep.subr.bf16.mxu0 0
    %1252 = vmatpush1.bf16.msra.mxu0 0
    %1253 = vmatprep.subr.bf16.mxu0 0
    %1254 = vmatpush1.bf16.msra.mxu0 0
    %1255 = vmatprep.subr.bf16.mxu0 0
    %1256 = vmatpush1.bf16.msra.mxu0 0
    %1257 = vmatprep.subr.bf16.mxu0 0
    %1258 = vmatpush1.bf16.msra.mxu0 0
    %1259 = vmatprep.subr.bf16.mxu0 0
    %1260 = vmatpush1.bf16.msra.mxu0 0
    %1261 = vmatprep.subr.bf16.mxu0 0
    %1262 = vmatpush1.bf16.msra.mxu0 0
    %1263 = vmatprep.subr.bf16.mxu0 0
    %1264 = vmatpush1.bf16.msra.mxu0 0
    %1265 = vmatprep.subr.bf16.mxu0 0
    %1266 = vmatpush1.bf16.msra.mxu0 0
    %1267 = vmatprep.mubr.bf16.mxu0 0
    %1268 = vmatmul.mubr.bf16.gmra.mrb[0].mxu0 %v1193
    %v1269 = vpop.f32.mrb[0].mxu0
    %v1270 = vadd.f32 0.0, %v1269
    %v1271 = vpop.f32.mrb[0].mxu0
    %v1272 = vadd.f32 0.0, %v1271
    %v1273 = vpop.f32.mrb[0].mxu0
    %v1274 = vpop.f32.mrb[0].mxu0
    %1275 = vdwg.mxu0
    %v1276 = vadd.f32 %v1189, %v1229
    %v1277 = vadd.f32 %v1190, %v1231
    %v1278 = vadd.f32 %v1191, %v1270
    %v1279 = vadd.f32 %v1192, %v1272
    %v1280 = vxor.u32 %v1276, 2147483648
    %v1281 = vxor.u32 %v1277, 2147483648
    %v1282 = vxor.u32 %v1278, 2147483648
    %v1283 = vmul.f32 %v1280, 1.442695
    %v1284 = vpow.pop %v1283
    %v1285 = vmul.f32 %v1281, 1.442695
    %v1286 = vpow.pop %v1285
    %v1287 = vmul.f32 %v1282, 1.442695
    %v1288 = vpow.pop %v1287
    %v1289 = vadd.f32 %v1284, 1.0
    %v1290 = vadd.f32 %v1286, 1.0
    %v1291 = vadd.f32 %v1288, 1.0
    %v1292 = vrcp.pop %v1289
    %v1293 = vmul.f32 1.0, %v1292
    %v1294 = vrcp.pop %v1290
    %v1295 = vmul.f32 1.0, %v1294
    %v1296 = vrcp.pop %v1291
    %v1297 = vmul.f32 1.0, %v1296
    %v1298 = vtanh.pop %v1279
    %v1299 = vmul.f32 %v1295, %v1186
    %v1300 = vmul.f32 %v1293, %v1298
    %v1301 = vadd.f32 %v1299, %v1300
    %v1302 = vtanh.pop %v1301
    %v1303 = vmul.f32 %v1297, %v1302
    %v1304 = vld [vmem:[#allocation2 + $0xc0] sm:$0xff]
    %v1305 = vld [vmem:[#allocation2 + $0xc8] sm:$0xff]
    %v1306 = vld [vmem:[#allocation2 + $0xd0] sm:$0xff]
    %v1307 = vld [vmem:[#allocation2 + $0xd8] sm:$0xff]
    %v1308 = vpack.c.bf16 %v1303, %v1303
    %1309 = vmatprep.subr.bf16.mxu0 %v556
    %1310 = vmatpush1.bf16.msra.mxu0 %v555
    %1311 = vmatprep.subr.bf16.mxu0 %v560
    %1312 = vmatpush1.bf16.msra.mxu0 %v559
    %1313 = vmatprep.subr.bf16.mxu0 %v564
    %1314 = vmatpush1.bf16.msra.mxu0 %v563
    %1315 = vmatprep.subr.bf16.mxu0 %v568
    %1316 = vmatpush1.bf16.msra.mxu0 %v567
    %1317 = vmatprep.subr.bf16.mxu0 %v572
    %1318 = vmatpush1.bf16.msra.mxu0 %v571
    %1319 = vmatprep.subr.bf16.mxu0 %v576
    %1320 = vmatpush1.bf16.msra.mxu0 %v575
    %1321 = vmatprep.subr.bf16.mxu0 %v580
    %1322 = vmatpush1.bf16.msra.mxu0 %v579
    %1323 = vmatprep.subr.bf16.mxu0 %v584
    %1324 = vmatpush1.bf16.msra.mxu0 %v583
    %1325 = vmatprep.subr.bf16.mxu0 0
    %1326 = vmatpush1.bf16.msra.mxu0 0
    %1327 = vmatprep.subr.bf16.mxu0 0
    %1328 = vmatpush1.bf16.msra.mxu0 0
    %1329 = vmatprep.subr.bf16.mxu0 0
    %1330 = vmatpush1.bf16.msra.mxu0 0
    %1331 = vmatprep.subr.bf16.mxu0 0
    %1332 = vmatpush1.bf16.msra.mxu0 0
    %1333 = vmatprep.subr.bf16.mxu0 0
    %1334 = vmatpush1.bf16.msra.mxu0 0
    %1335 = vmatprep.subr.bf16.mxu0 0
    %1336 = vmatpush1.bf16.msra.mxu0 0
    %1337 = vmatprep.subr.bf16.mxu0 0
    %1338 = vmatpush1.bf16.msra.mxu0 0
    %1339 = vmatprep.subr.bf16.mxu0 0
    %1340 = vmatpush1.bf16.msra.mxu0 0
    %1341 = vmatprep.mubr.bf16.mxu0 0
    %1342 = vmatmul.mubr.bf16.gmra.mrb[0].mxu0 %v1308
    %v1343 = vpop.f32.mrb[0].mxu0
    %v1344 = vadd.f32 0.0, %v1343
    %v1345 = vpop.f32.mrb[0].mxu0
    %v1346 = vadd.f32 0.0, %v1345
    %v1347 = vpop.f32.mrb[0].mxu0
    %v1348 = vpop.f32.mrb[0].mxu0
    %1349 = vdwg.mxu0
    %1350 = vmatprep.subr.bf16.mxu0 %v558
    %1351 = vmatpush1.bf16.msra.mxu0 %v557
    %1352 = vmatprep.subr.bf16.mxu0 %v562
    %1353 = vmatpush1.bf16.msra.mxu0 %v561
    %1354 = vmatprep.subr.bf16.mxu0 %v566
    %1355 = vmatpush1.bf16.msra.mxu0 %v565
    %1356 = vmatprep.subr.bf16.mxu0 %v570
    %1357 = vmatpush1.bf16.msra.mxu0 %v569
    %1358 = vmatprep.subr.bf16.mxu0 %v574
    %1359 = vmatpush1.bf16.msra.mxu0 %v573
    %1360 = vmatprep.subr.bf16.mxu0 %v578
    %1361 = vmatpush1.bf16.msra.mxu0 %v577
    %1362 = vmatprep.subr.bf16.mxu0 %v582
    %1363 = vmatpush1.bf16.msra.mxu0 %v581
    %1364 = vmatprep.subr.bf16.mxu0 %v586
    %1365 = vmatpush1.bf16.msra.mxu0 %v585
    %1366 = vmatprep.subr.bf16.mxu0 0
    %1367 = vmatpush1.bf16.msra.mxu0 0
    %1368 = vmatprep.subr.bf16.mxu0 0
    %1369 = vmatpush1.bf16.msra.mxu0 0
    %1370 = vmatprep.subr.bf16.mxu0 0
    %1371 = vmatpush1.bf16.msra.mxu0 0
    %1372 = vmatprep.subr.bf16.mxu0 0
    %1373 = vmatpush1.bf16.msra.mxu0 0
    %1374 = vmatprep.subr.bf16.mxu0 0
    %1375 = vmatpush1.bf16.msra.mxu0 0
    %1376 = vmatprep.subr.bf16.mxu0 0
    %1377 = vmatpush1.bf16.msra.mxu0 0
    %1378 = vmatprep.subr.bf16.mxu0 0
    %1379 = vmatpush1.bf16.msra.mxu0 0
    %1380 = vmatprep.subr.bf16.mxu0 0
    %1381 = vmatpush1.bf16.msra.mxu0 0
    %1382 = vmatprep.mubr.bf16.mxu0 0
    %1383 = vmatmul.mubr.bf16.gmra.mrb[0].mxu0 %v1308
    %v1384 = vpop.f32.mrb[0].mxu0
    %v1385 = vadd.f32 0.0, %v1384
    %v1386 = vpop.f32.mrb[0].mxu0
    %v1387 = vadd.f32 0.0, %v1386
    %v1388 = vpop.f32.mrb[0].mxu0
    %v1389 = vpop.f32.mrb[0].mxu0
    %1390 = vdwg.mxu0
    %v1391 = vadd.f32 %v1304, %v1344
    %v1392 = vadd.f32 %v1305, %v1346
    %v1393 = vadd.f32 %v1306, %v1385
    %v1394 = vadd.f32 %v1307, %v1387
    %v1395 = vxor.u32 %v1391, 2147483648
    %v1396 = vxor.u32 %v1392, 2147483648
    %v1397 = vxor.u32 %v1393, 2147483648
    %v1398 = vmul.f32 %v1395, 1.442695
    %v1399 = vpow.pop %v1398
    %v1400 = vmul.f32 %v1396, 1.442695
    %v1401 = vpow.pop %v1400
    %v1402 = vmul.f32 %v1397, 1.442695
    %v1403 = vpow.pop %v1402
    %v1404 = vadd.f32 %v1399, 1.0
    %v1405 = vadd.f32 %v1401, 1.0
    %v1406 = vadd.f32 %v1403, 1.0
    %v1407 = vrcp.pop %v1404
    %v1408 = vmul.f32 1.0, %v1407
    %v1409 = vrcp.pop %v1405
    %v1410 = vmul.f32 1.0, %v1409
    %v1411 = vrcp.pop %v1406
    %v1412 = vmul.f32 1.0, %v1411
    %v1413 = vtanh.pop %v1394
    %v1414 = vmul.f32 %v1410, %v1301
    %v1415 = vmul.f32 %v1408, %v1413
    %v1416 = vadd.f32 %v1414, %v1415
    %v1417 = vtanh.pop %v1416
    %v1418 = vmul.f32 %v1412, %v1417
    %v1419 = vld [vmem:[#allocation2 + $0xe0] sm:$0xff]
    %v1420 = vld [vmem:[#allocation2 + $0xe8] sm:$0xff]
    %v1421 = vld [vmem:[#allocation2 + $0xf0] sm:$0xff]
    %v1422 = vld [vmem:[#allocation2 + $0xf8] sm:$0xff]
    %v1423 = vpack.c.bf16 %v1418, %v1418
    %1424 = vmatprep.subr.bf16.mxu0 %v556
    %1425 = vmatpush1.bf16.msra.mxu0 %v555
    %1426 = vmatprep.subr.bf16.mxu0 %v560
    %1427 = vmatpush1.bf16.msra.mxu0 %v559
    %1428 = vmatprep.subr.bf16.mxu0 %v564
    %1429 = vmatpush1.bf16.msra.mxu0 %v563
    %1430 = vmatprep.subr.bf16.mxu0 %v568
    %1431 = vmatpush1.bf16.msra.mxu0 %v567
    %1432 = vmatprep.subr.bf16.mxu0 %v572
    %1433 = vmatpush1.bf16.msra.mxu0 %v571
    %1434 = vmatprep.subr.bf16.mxu0 %v576
    %1435 = vmatpush1.bf16.msra.mxu0 %v575
    %1436 = vmatprep.subr.bf16.mxu0 %v580
    %1437 = vmatpush1.bf16.msra.mxu0 %v579
    %1438 = vmatprep.subr.bf16.mxu0 %v584
    %1439 = vmatpush1.bf16.msra.mxu0 %v583
    %1440 = vmatprep.subr.bf16.mxu0 0
    %1441 = vmatpush1.bf16.msra.mxu0 0
    %1442 = vmatprep.subr.bf16.mxu0 0
    %1443 = vmatpush1.bf16.msra.mxu0 0
    %1444 = vmatprep.subr.bf16.mxu0 0
    %1445 = vmatpush1.bf16.msra.mxu0 0
    %1446 = vmatprep.subr.bf16.mxu0 0
    %1447 = vmatpush1.bf16.msra.mxu0 0
    %1448 = vmatprep.subr.bf16.mxu0 0
    %1449 = vmatpush1.bf16.msra.mxu0 0
    %1450 = vmatprep.subr.bf16.mxu0 0
    %1451 = vmatpush1.bf16.msra.mxu0 0
    %1452 = vmatprep.subr.bf16.mxu0 0
    %1453 = vmatpush1.bf16.msra.mxu0 0
    %1454 = vmatprep.subr.bf16.mxu0 0
    %1455 = vmatpush1.bf16.msra.mxu0 0
    %1456 = vmatprep.mubr.bf16.mxu0 0
    %1457 = vmatmul.mubr.bf16.gmra.mrb[0].mxu0 %v1423
    %v1458 = vpop.f32.mrb[0].mxu0
    %v1459 = vadd.f32 0.0, %v1458
    %v1460 = vpop.f32.mrb[0].mxu0
    %v1461 = vadd.f32 0.0, %v1460
    %v1462 = vpop.f32.mrb[0].mxu0
    %v1463 = vpop.f32.mrb[0].mxu0
    %1464 = vdwg.mxu0
    %1465 = vmatprep.subr.bf16.mxu0 %v558
    %1466 = vmatpush1.bf16.msra.mxu0 %v557
    %1467 = vmatprep.subr.bf16.mxu0 %v562
    %1468 = vmatpush1.bf16.msra.mxu0 %v561
    %1469 = vmatprep.subr.bf16.mxu0 %v566
    %1470 = vmatpush1.bf16.msra.mxu0 %v565
    %1471 = vmatprep.subr.bf16.mxu0 %v570
    %1472 = vmatpush1.bf16.msra.mxu0 %v569
    %1473 = vmatprep.subr.bf16.mxu0 %v574
    %1474 = vmatpush1.bf16.msra.mxu0 %v573
    %1475 = vmatprep.subr.bf16.mxu0 %v578
    %1476 = vmatpush1.bf16.msra.mxu0 %v577
    %1477 = vmatprep.subr.bf16.mxu0 %v582
    %1478 = vmatpush1.bf16.msra.mxu0 %v581
    %1479 = vmatprep.subr.bf16.mxu0 %v586
    %1480 = vmatpush1.bf16.msra.mxu0 %v585
    %1481 = vmatprep.subr.bf16.mxu0 0
    %1482 = vmatpush1.bf16.msra.mxu0 0
    %1483 = vmatprep.subr.bf16.mxu0 0
    %1484 = vmatpush1.bf16.msra.mxu0 0
    %1485 = vmatprep.subr.bf16.mxu0 0
    %1486 = vmatpush1.bf16.msra.mxu0 0
    %1487 = vmatprep.subr.bf16.mxu0 0
    %1488 = vmatpush1.bf16.msra.mxu0 0
    %1489 = vmatprep.subr.bf16.mxu0 0
    %1490 = vmatpush1.bf16.msra.mxu0 0
    %1491 = vmatprep.subr.bf16.mxu0 0
    %1492 = vmatpush1.bf16.msra.mxu0 0
    %1493 = vmatprep.subr.bf16.mxu0 0
    %1494 = vmatpush1.bf16.msra.mxu0 0
    %1495 = vmatprep.subr.bf16.mxu0 0
    %1496 = vmatpush1.bf16.msra.mxu0 0
    %1497 = vmatprep.mubr.bf16.mxu0 0
    %1498 = vmatmul.mubr.bf16.gmra.mrb[0].mxu0 %v1423
    %v1499 = vpop.f32.mrb[0].mxu0
    %v1500 = vadd.f32 0.0, %v1499
    %v1501 = vpop.f32.mrb[0].mxu0
    %v1502 = vadd.f32 0.0, %v1501
    %v1503 = vpop.f32.mrb[0].mxu0
    %v1504 = vpop.f32.mrb[0].mxu0
    %1505 = vdwg.mxu0
    %v1506 = vadd.f32 %v1419, %v1459
    %v1507 = vadd.f32 %v1420, %v1461
    %v1508 = vadd.f32 %v1421, %v1500
    %v1509 = vadd.f32 %v1422, %v1502
    %v1510 = vxor.u32 %v1506, 2147483648
    %v1511 = vxor.u32 %v1507, 2147483648
    %v1512 = vxor.u32 %v1508, 2147483648
    %v1513 = vmul.f32 %v1510, 1.442695
    %v1514 = vpow.pop %v1513
    %v1515 = vmul.f32 %v1511, 1.442695
    %v1516 = vpow.pop %v1515
    %v1517 = vmul.f32 %v1512, 1.442695
    %v1518 = vpow.pop %v1517
    %v1519 = vadd.f32 %v1514, 1.0
    %v1520 = vadd.f32 %v1516, 1.0
    %v1521 = vadd.f32 %v1518, 1.0
    %v1522 = vrcp.pop %v1519
    %v1523 = vmul.f32 1.0, %v1522
    %v1524 = vrcp.pop %v1520
    %v1525 = vmul.f32 1.0, %v1524
    %v1526 = vrcp.pop %v1521
    %v1527 = vmul.f32 1.0, %v1526
    %v1528 = vtanh.pop %v1509
    %v1529 = vmul.f32 %v1525, %v1416
    %v1530 = vmul.f32 %v1523, %v1528
    %v1531 = vadd.f32 %v1529, %v1530
    %v1532 = vtanh.pop %v1531
    %v1533 = vmul.f32 %v1527, %v1532
    %s1534 = smul.u32 4, 16
    %s1535 = smul.u32 %s1534, 4
    %s1536 = sshll.u32 %s1535, 4
    %1537 = dma.done [#allocation7], %s1536
    %s1538 = smul.u32 1, 4
    %s1539 = sshll.u32 %s1538, 4
    %1540 = dma.done %s72, %s1539
    %s1541 = smul.u32 4, 64
    %s1542 = smul.u32 %s1541, 1
    %s1543 = sshll.u32 %s1542, 4
    %1544 = dma.done %s117, %s1543
    %s1545 = smul.u32 1, 1
    %s1546 = sshll.u32 %s1545, 4
    %1547 = dma.done %s129, %s1546
    %v1548 = vpack.c.bf16 %v1533, %v1533
    %v1549 = vld [vmem:[#allocation3] sm:$0xff]
    %v1550 = vld [vmem:[#allocation3 + $0x8] sm:$0xff]
    %v1551 = vld [vmem:[#allocation3 + $0x10] sm:$0xff]
    %v1552 = vld [vmem:[#allocation3 + $0x18] sm:$0xff]
    %v1553 = vld [vmem:[#allocation3 + $0x20] sm:$0xff]
    %v1554 = vld [vmem:[#allocation3 + $0x28] sm:$0xff]
    %v1555 = vld [vmem:[#allocation3 + $0x30] sm:$0xff]
    %v1556 = vld [vmem:[#allocation3 + $0x38] sm:$0xff]
    %v1557 = vld [vmem:[#allocation3 + $0x40] sm:$0xff]
    %v1558 = vld [vmem:[#allocation3 + $0x48] sm:$0xff]
    %v1559 = vld [vmem:[#allocation3 + $0x50] sm:$0xff]
    %v1560 = vld [vmem:[#allocation3 + $0x58] sm:$0xff]
    %v1561 = vld [vmem:[#allocation3 + $0x60] sm:$0xff]
    %v1562 = vld [vmem:[#allocation3 + $0x68] sm:$0xff]
    %v1563 = vld [vmem:[#allocation3 + $0x70] sm:$0xff]
    %v1564 = vld [vmem:[#allocation3 + $0x78] sm:$0xff]
    %v1565 = vld [vmem:[#allocation3 + $0x80] sm:$0xff]
    %v1566 = vld [vmem:[#allocation3 + $0x88] sm:$0xff]
    %v1567 = vld [vmem:[#allocation3 + $0x90] sm:$0xff]
    %v1568 = vld [vmem:[#allocation3 + $0x98] sm:$0xff]
    %v1569 = vld [vmem:[#allocation3 + $0xa0] sm:$0xff]
    %v1570 = vld [vmem:[#allocation3 + $0xa8] sm:$0xff]
    %v1571 = vld [vmem:[#allocation3 + $0xb0] sm:$0xff]
    %v1572 = vld [vmem:[#allocation3 + $0xb8] sm:$0xff]
    %v1573 = vld [vmem:[#allocation3 + $0xc0] sm:$0xff]
    %v1574 = vld [vmem:[#allocation3 + $0xc8] sm:$0xff]
    %v1575 = vld [vmem:[#allocation3 + $0xd0] sm:$0xff]
    %v1576 = vld [vmem:[#allocation3 + $0xd8] sm:$0xff]
    %v1577 = vld [vmem:[#allocation3 + $0xe0] sm:$0xff]
    %v1578 = vld [vmem:[#allocation3 + $0xe8] sm:$0xff]
    %v1579 = vld [vmem:[#allocation3 + $0xf0] sm:$0xff]
    %v1580 = vld [vmem:[#allocation3 + $0xf8] sm:$0xff]
    %v1581 = vld [vmem:[#allocation4] sm:$0xf]
    %v1583 = vlaneseq
    %v1584 = vshrl.u32 %v1583, 7
    %v1585 = vsub.s32 0, %v1584
    %v1586 = vrot.slane %v1581, %v1585
    %v1587 = vlaneseq
    %v1588 = vshrl.u32 %v1587, 7
    %v1589 = vsub.s32 1, %v1588
    %v1590 = vrot.slane %v1581, %v1589
    %v1591 = vlaneseq
    %v1592 = vshrl.u32 %v1591, 7
    %v1593 = vsub.s32 2, %v1592
    %v1594 = vrot.slane %v1581, %v1593
    %v1595 = vlaneseq
    %v1596 = vshrl.u32 %v1595, 7
    %v1597 = vsub.s32 3, %v1596
    %v1598 = vrot.slane %v1581, %v1597
    %1603 = vmatprep.subr.bf16.mxu0 %v1550
    %1604 = vmatpush1.bf16.msra.mxu0 %v1549
    %1605 = vmatprep.subr.bf16.mxu0 %v1554
    %1606 = vmatpush1.bf16.msra.mxu0 %v1553
    %1607 = vmatprep.subr.bf16.mxu0 %v1558
    %1608 = vmatpush1.bf16.msra.mxu0 %v1557
    %1609 = vmatprep.subr.bf16.mxu0 %v1562
    %1610 = vmatpush1.bf16.msra.mxu0 %v1561
    %1611 = vmatprep.subr.bf16.mxu0 %v1566
    %1612 = vmatpush1.bf16.msra.mxu0 %v1565
    %1613 = vmatprep.subr.bf16.mxu0 %v1570
    %1614 = vmatpush1.bf16.msra.mxu0 %v1569
    %1615 = vmatprep.subr.bf16.mxu0 %v1574
    %1616 = vmatpush1.bf16.msra.mxu0 %v1573
    %1617 = vmatprep.subr.bf16.mxu0 %v1578
    %1618 = vmatpush1.bf16.msra.mxu0 %v1577
    %1619 = vmatprep.subr.bf16.mxu0 0
    %1620 = vmatpush1.bf16.msra.mxu0 0
    %1621 = vmatprep.subr.bf16.mxu0 0
    %1622 = vmatpush1.bf16.msra.mxu0 0
    %1623 = vmatprep.subr.bf16.mxu0 0
    %1624 = vmatpush1.bf16.msra.mxu0 0
    %1625 = vmatprep.subr.bf16.mxu0 0
    %1626 = vmatpush1.bf16.msra.mxu0 0
    %1627 = vmatprep.subr.bf16.mxu0 0
    %1628 = vmatpush1.bf16.msra.mxu0 0
    %1629 = vmatprep.subr.bf16.mxu0 0
    %1630 = vmatpush1.bf16.msra.mxu0 0
    %1631 = vmatprep.subr.bf16.mxu0 0
    %1632 = vmatpush1.bf16.msra.mxu0 0
    %1633 = vmatprep.subr.bf16.mxu0 0
    %1634 = vmatpush1.bf16.msra.mxu0 0
    %1635 = vmatprep.mubr.bf16.mxu0 0
    %1636 = vmatmul.mubr.bf16.gmra.mrb[0].mxu0 %v1548
    %v1637 = vpop.f32.mrb[0].mxu0
    %v1638 = vadd.f32 %v1586, %v1637
    %v1639 = vpop.f32.mrb[0].mxu0
    %v1640 = vadd.f32 %v1590, %v1639
    %v1641 = vpop.f32.mrb[0].mxu0
    %v1642 = vpop.f32.mrb[0].mxu0
    %1643 = vdwg.mxu0
    %1644 = vmatprep.subr.bf16.mxu0 %v1552
    %1645 = vmatpush1.bf16.msra.mxu0 %v1551
    %1646 = vmatprep.subr.bf16.mxu0 %v1556
    %1647 = vmatpush1.bf16.msra.mxu0 %v1555
    %1648 = vmatprep.subr.bf16.mxu0 %v1560
    %1649 = vmatpush1.bf16.msra.mxu0 %v1559
    %1650 = vmatprep.subr.bf16.mxu0 %v1564
    %1651 = vmatpush1.bf16.msra.mxu0 %v1563
    %1652 = vmatprep.subr.bf16.mxu0 %v1568
    %1653 = vmatpush1.bf16.msra.mxu0 %v1567
    %1654 = vmatprep.subr.bf16.mxu0 %v1572
    %1655 = vmatpush1.bf16.msra.mxu0 %v1571
    %1656 = vmatprep.subr.bf16.mxu0 %v1576
    %1657 = vmatpush1.bf16.msra.mxu0 %v1575
    %1658 = vmatprep.subr.bf16.mxu0 %v1580
    %1659 = vmatpush1.bf16.msra.mxu0 %v1579
    %1660 = vmatprep.subr.bf16.mxu0 0
    %1661 = vmatpush1.bf16.msra.mxu0 0
    %1662 = vmatprep.subr.bf16.mxu0 0
    %1663 = vmatpush1.bf16.msra.mxu0 0
    %1664 = vmatprep.subr.bf16.mxu0 0
    %1665 = vmatpush1.bf16.msra.mxu0 0
    %1666 = vmatprep.subr.bf16.mxu0 0
    %1667 = vmatpush1.bf16.msra.mxu0 0
    %1668 = vmatprep.subr.bf16.mxu0 0
    %1669 = vmatpush1.bf16.msra.mxu0 0
    %1670 = vmatprep.subr.bf16.mxu0 0
    %1671 = vmatpush1.bf16.msra.mxu0 0
    %1672 = vmatprep.subr.bf16.mxu0 0
    %1673 = vmatpush1.bf16.msra.mxu0 0
    %1674 = vmatprep.subr.bf16.mxu0 0
    %1675 = vmatpush1.bf16.msra.mxu0 0
    %1676 = vmatprep.mubr.bf16.mxu0 0
    %1677 = vmatmul.mubr.bf16.gmra.mrb[0].mxu0 %v1548
    %v1678 = vpop.f32.mrb[0].mxu0
    %v1679 = vadd.f32 %v1594, %v1678
    %v1680 = vpop.f32.mrb[0].mxu0
    %v1681 = vadd.f32 %v1598, %v1680
    %v1682 = vpop.f32.mrb[0].mxu0
    %v1683 = vpop.f32.mrb[0].mxu0
    %1684 = vdwg.mxu0
    %v1685 = vmax.f32 %v1638, 0.0
    %v1686 = vmax.f32 %v1640, 0.0
    %v1687 = vmax.f32 %v1679, 0.0
    %v1688 = vmax.f32 %v1681, 0.0
    %v1689 = vpack.c.bf16 %v1685, %v1685
    %v1690 = vpack.c.bf16 %v1686, %v1686
    %v1691 = vpack.c.bf16 %v1687, %v1687
    %v1692 = vpack.c.bf16 %v1688, %v1688
    %v1693 = vld [vmem:[#allocation5] sm:$0xff]
    %v1694 = vld [vmem:[#allocation5 + $0x8] sm:$0xff]
    %v1695 = vld [vmem:[#allocation5 + $0x10] sm:$0xff]
    %v1696 = vld [vmem:[#allocation5 + $0x18] sm:$0xff]
    %v1697 = vld [vmem:[#allocation5 + $0x20] sm:$0xff]
    %v1698 = vld [vmem:[#allocation5 + $0x28] sm:$0xff]
    %v1699 = vld [vmem:[#allocation5 + $0x30] sm:$0xff]
    %v1700 = vld [vmem:[#allocation5 + $0x38] sm:$0xff]
    %v1701 = vld [vmem:[#allocation5 + $0x40] sm:$0xff]
    %v1702 = vld [vmem:[#allocation5 + $0x48] sm:$0xff]
    %v1703 = vld [vmem:[#allocation5 + $0x50] sm:$0xff]
    %v1704 = vld [vmem:[#allocation5 + $0x58] sm:$0xff]
    %v1705 = vld [vmem:[#allocation5 + $0x60] sm:$0xff]
    %v1706 = vld [vmem:[#allocation5 + $0x68] sm:$0xff]
    %v1707 = vld [vmem:[#allocation5 + $0x70] sm:$0xff]
    %v1708 = vld [vmem:[#allocation5 + $0x78] sm:$0xff]
    %v1709 = vld [vmem:[#allocation5 + $0x80] sm:$0xff]
    %v1710 = vld [vmem:[#allocation5 + $0x88] sm:$0xff]
    %v1711 = vld [vmem:[#allocation5 + $0x90] sm:$0xff]
    %v1712 = vld [vmem:[#allocation5 + $0x98] sm:$0xff]
    %v1713 = vld [vmem:[#allocation5 + $0xa0] sm:$0xff]
    %v1714 = vld [vmem:[#allocation5 + $0xa8] sm:$0xff]
    %v1715 = vld [vmem:[#allocation5 + $0xb0] sm:$0xff]
    %v1716 = vld [vmem:[#allocation5 + $0xb8] sm:$0xff]
    %v1717 = vld [vmem:[#allocation5 + $0xc0] sm:$0xff]
    %v1718 = vld [vmem:[#allocation5 + $0xc8] sm:$0xff]
    %v1719 = vld [vmem:[#allocation5 + $0xd0] sm:$0xff]
    %v1720 = vld [vmem:[#allocation5 + $0xd8] sm:$0xff]
    %v1721 = vld [vmem:[#allocation5 + $0xe0] sm:$0xff]
    %v1722 = vld [vmem:[#allocation5 + $0xe8] sm:$0xff]
    %v1723 = vld [vmem:[#allocation5 + $0xf0] sm:$0xff]
    %v1724 = vld [vmem:[#allocation5 + $0xf8] sm:$0xff]
    %v1725 = vld [vmem:[#allocation6] sm:$0x1]
    %v1727 = vlaneseq
    %v1728 = vshrl.u32 %v1727, 7
    %v1729 = vsub.s32 0, %v1728
    %v1730 = vrot.slane %v1725, %v1729
    %1732 = vmatprep.subr.bf16.mxu0 0
    %1733 = vmatpush1.bf16.msra.mxu0 %v1693
    %1734 = vmatprep.subr.bf16.mxu0 0
    %1735 = vmatpush1.bf16.msra.mxu0 %v1694
    %1736 = vmatprep.subr.bf16.mxu0 0
    %1737 = vmatpush1.bf16.msra.mxu0 %v1695
    %1738 = vmatprep.subr.bf16.mxu0 0
    %1739 = vmatpush1.bf16.msra.mxu0 %v1696
    %1740 = vmatprep.subr.bf16.mxu0 0
    %1741 = vmatpush1.bf16.msra.mxu0 %v1697
    %1742 = vmatprep.subr.bf16.mxu0 0
    %1743 = vmatpush1.bf16.msra.mxu0 %v1698
    %1744 = vmatprep.subr.bf16.mxu0 0
    %1745 = vmatpush1.bf16.msra.mxu0 %v1699
    %1746 = vmatprep.subr.bf16.mxu0 0
    %1747 = vmatpush1.bf16.msra.mxu0 %v1700
    %1748 = vmatprep.subr.bf16.mxu0 0
    %1749 = vmatpush1.bf16.msra.mxu0 %v1701
    %1750 = vmatprep.subr.bf16.mxu0 0
    %1751 = vmatpush1.bf16.msra.mxu0 %v1702
    %1752 = vmatprep.subr.bf16.mxu0 0
    %1753 = vmatpush1.bf16.msra.mxu0 %v1703
    %1754 = vmatprep.subr.bf16.mxu0 0
    %1755 = vmatpush1.bf16.msra.mxu0 %v1704
    %1756 = vmatprep.subr.bf16.mxu0 0
    %1757 = vmatpush1.bf16.msra.mxu0 %v1705
    %1758 = vmatprep.subr.bf16.mxu0 0
    %1759 = vmatpush1.bf16.msra.mxu0 %v1706
    %1760 = vmatprep.subr.bf16.mxu0 0
    %1761 = vmatpush1.bf16.msra.mxu0 %v1707
    %1762 = vmatprep.subr.bf16.mxu0 0
    %1763 = vmatpush1.bf16.msra.mxu0 %v1708
    %1764 = vmatprep.mubr.bf16.mxu0 %v1690
    %1765 = vmatmul.mubr.bf16.gmra.mrb[0].mxu0 %v1689
    %v1766 = vpop.f32.mrb[0].mxu0
    %v1767 = vadd.f32 %v1730, %v1766
    %v1768 = vpop.f32.mrb[0].mxu0
    %v1769 = vpop.f32.mrb[0].mxu0
    %v1770 = vpop.f32.mrb[0].mxu0
    %1771 = vdwg.mxu0
    %1772 = vmatprep.subr.bf16.mxu0 0
    %1773 = vmatpush1.bf16.msra.mxu0 %v1709
    %1774 = vmatprep.subr.bf16.mxu0 0
    %1775 = vmatpush1.bf16.msra.mxu0 %v1710
    %1776 = vmatprep.subr.bf16.mxu0 0
    %1777 = vmatpush1.bf16.msra.mxu0 %v1711
    %1778 = vmatprep.subr.bf16.mxu0 0
    %1779 = vmatpush1.bf16.msra.mxu0 %v1712
    %1780 = vmatprep.subr.bf16.mxu0 0
    %1781 = vmatpush1.bf16.msra.mxu0 %v1713
    %1782 = vmatprep.subr.bf16.mxu0 0
    %1783 = vmatpush1.bf16.msra.mxu0 %v1714
    %1784 = vmatprep.subr.bf16.mxu0 0
    %1785 = vmatpush1.bf16.msra.mxu0 %v1715
    %1786 = vmatprep.subr.bf16.mxu0 0
    %1787 = vmatpush1.bf16.msra.mxu0 %v1716
    %1788 = vmatprep.subr.bf16.mxu0 0
    %1789 = vmatpush1.bf16.msra.mxu0 %v1717
    %1790 = vmatprep.subr.bf16.mxu0 0
    %1791 = vmatpush1.bf16.msra.mxu0 %v1718
    %1792 = vmatprep.subr.bf16.mxu0 0
    %1793 = vmatpush1.bf16.msra.mxu0 %v1719
    %1794 = vmatprep.subr.bf16.mxu0 0
    %1795 = vmatpush1.bf16.msra.mxu0 %v1720
    %1796 = vmatprep.subr.bf16.mxu0 0
    %1797 = vmatpush1.bf16.msra.mxu0 %v1721
    %1798 = vmatprep.subr.bf16.mxu0 0
    %1799 = vmatpush1.bf16.msra.mxu0 %v1722
    %1800 = vmatprep.subr.bf16.mxu0 0
    %1801 = vmatpush1.bf16.msra.mxu0 %v1723
    %1802 = vmatprep.subr.bf16.mxu0 0
    %1803 = vmatpush1.bf16.msra.mxu0 %v1724
    %1804 = vmatprep.mubr.bf16.mxu0 %v1692
    %1805 = vmatmul.mubr.bf16.gmra.mrb[0].mxu0 %v1691
    %v1806 = vpop.f32.mrb[0].mxu0
    %v1807 = vadd.f32 %v1767, %v1806
    %v1808 = vpop.f32.mrb[0].mxu0
    %v1809 = vpop.f32.mrb[0].mxu0
    %v1810 = vpop.f32.mrb[0].mxu0
    %1811 = vdwg.mxu0
    %1812 = vst [vmem:[#allocation11] sm:$0xff] %v1807
    // Predicated region
    $region86: #{tpu_custom_call.1} parent=1 // pred_check
      _
    $region87: #{tpu_custom_call.1} parent=1 // pred_check_branch
      %1814 = sbr.rel (0) target = $region89
    $region88: #{tpu_custom_call.1} parent=1 // pred_region
      %s1816 = ssub.s32 128, 128
      %1817 = vsyncadd [#allocation10], %s1816
      %s1819 = sshll.u32 [#allocation11], 4
      %s1820 = int_to_ptr.vmem [resolvable:$true] %s1819
      %1822 = dma.vmem_to_hbm [thread:$0]  %s1820, 128, %s8, [#allocation10]
    $region89: #{tpu_custom_call.1} parent=1 // pred_fallthru
      _
    // Predicated region
    $region90: #{tpu_custom_call.1} parent=1 // pred_check
      _
    $region91: #{tpu_custom_call.1} parent=1 // pred_check_branch
      %1824 = sbr.rel (0) target = $region93
    $region92: #{tpu_custom_call.1} parent=1 // pred_region
      %1825 = dma.done [#allocation10], 128
    $region93: #{tpu_custom_call.1} parent=1 // pred_fallthru
      _
    %1826 = vsyncpa [#allocation9], 1
    %1827 = vsyncpa [#allocation10], 1
  %1828 = vsyncmov [#allocation7]
  %s1829 = vpop.sfrf %1828
  %p1830 = scmp.eq.s32.totalorder %s1829, 0
  %p1831 = pneg %p1830
  %1833 = shalt.err (%p1831)
  %s1834 = scalar_lea.sflag [#allocation7], 1
  %1835 = vsyncmov %s1834
  %s1836 = vpop.sfrf %1835
  %p1837 = scmp.eq.s32.totalorder %s1836, 0
  %p1838 = pneg %p1837
  %1840 = shalt.err (%p1838)
  %s1841 = scalar_lea.sflag [#allocation7], 2
  %1842 = vsyncmov %s1841
  %s1843 = vpop.sfrf %1842
  %p1844 = scmp.eq.s32.totalorder %s1843, 0
  %p1845 = pneg %p1844
  %1847 = shalt.err (%p1845)
  %s1848 = scalar_lea.sflag [#allocation7], 3
  %1849 = vsyncmov %s1848
  %s1850 = vpop.sfrf %1849
  %p1851 = scmp.eq.s32.totalorder %s1850, 0
  %p1852 = pneg %p1851
  %1854 = shalt.err (%p1852)

</llo_original>
